<compile_context>
chip_gen: v7x
topology: tpu7x:2x2x1
jax: 0.10.0
libtpu: 0.0.40
codegen_flags: <defaults>
</compile_context>

<pallas_src>
import functools
from math import sqrt

import jax
import jax.numpy as jnp
from jax import lax
from jax.experimental import pallas as pl
from jax.experimental.pallas import tpu as pltpu


def _swish(v):
    return v * jax.nn.sigmoid(v)


def _output_block_kernel(rbf_ref, x_ref, i_ref,
                         w_rbf_ref, w_lin_ref, b_lin_ref, w_out_ref,
                         o_ref, acc_ref,
                         *, num_edges, edge_tile, num_layers):
    e = pl.program_id(0)

    @pl.when(e == 0)
    def _init():
        acc_ref[...] = jnp.zeros_like(acc_ref)

    # ---- edge-level: h = lin_rbf(rbf) * x  -------------------------------
    g = jnp.dot(rbf_ref[...], w_rbf_ref[...],
                preferred_element_type=jnp.float32)
    h = g * x_ref[...]

    # Zero out-of-range rows of a partial last tile so padded garbage (which
    # could be NaN/Inf) never feeds the scatter matmul.
    row = e * edge_tile + lax.broadcasted_iota(jnp.int32, (edge_tile, 1), 0)
    h = jnp.where(row < num_edges, h, 0.0)

    # ---- scatter-sum into node accumulator via one-hot matmul (MXU) ------
    # onehot_t[n, e_local] = [ i[e_local] == n ]  -> standard matmul orientation.
    n_nodes = acc_ref.shape[0]
    node_iota = lax.broadcasted_iota(jnp.int32, (n_nodes, edge_tile), 0)
    onehot_t = (i_ref[...] == node_iota).astype(jnp.float32)     # [N, tile_e]
    acc_ref[...] += jnp.dot(onehot_t, h,
                            preferred_element_type=jnp.float32)  # [N, H]

    # ---- finalize: hidden MLP + output projection on node features -------
    @pl.when(e == pl.num_programs(0) - 1)
    def _finalize():
        z = acc_ref[...]
        for l in range(num_layers):                              # static unroll
            z = _swish(jnp.dot(z, w_lin_ref[l],
                               preferred_element_type=jnp.float32)
                       + b_lin_ref[l:l + 1, :])
        # TODO(synk): nn.Dropout(p=0.1) stochastic path (self.dropout=True) is
        # not implemented; this is the eval / dropout=False path.
        o_ref[...] = jnp.dot(z, w_out_ref[...],
                             preferred_element_type=jnp.float32
                             ).astype(o_ref.dtype)


def output_block_forward(x, rbf, i, num_nodes, params, *, edge_tile=256):
    """x: f32 [E, H] edge features; rbf: f32 [E, R]; i: int32 [E] target node ids."""
    E, H = x.shape
    R = rbf.shape[1]
    w_rbf = params["w_rbf"]                 # [R, H]
    w_lins = params["w_lins"]               # [L, H, H]
    b_lins = params["b_lins"]               # [L, H]
    w_out = params["w_out"]                 # [H, out_dim]
    L = int(w_lins.shape[0])
    out_dim = int(w_out.shape[1])
    N = int(num_nodes)

    # TODO(synk): the node accumulator is one (N, H) VMEM block; very large
    # graphs (N*H*4 approaching VMEM) would need node-dimension tiling.
    tile_e = E if E <= edge_tile else edge_tile
    # tile_e == E is always legal (full-extent block); otherwise it must be
    # sublane/lane aligned for the (tile_e, H) and (1, tile_e) blocks.
    assert tile_e == E or (tile_e % 128 == 0)
    grid = (pl.cdiv(E, tile_e),)

    i_row = i.reshape(1, E).astype(jnp.int32)

    def edge_spec(width):
        return pl.BlockSpec((tile_e, width), lambda e: (e, 0))

    def full2(shape):
        return pl.BlockSpec(shape, lambda e: (0, 0))

    flops = (2 * E * R * H + E * H            # rbf matmul + elementwise mul
             + 2 * E * N * H                  # one-hot scatter matmul
             + L * (2 * N * H * H + N * H)    # hidden layers
             + 2 * N * H * out_dim)           # output projection
    bytes_accessed = 4 * (E * R + E * H + E
                          + R * H + L * H * H + L * H + H * out_dim
                          + N * out_dim)
    cost = pl.CostEstimate(flops=int(flops),
                           transcendentals=int(L * N * H),
                           bytes_accessed=int(bytes_accessed))

    kernel = functools.partial(_output_block_kernel,
                               num_edges=E, edge_tile=tile_e, num_layers=L)

    return pl.pallas_call(
        kernel,
        out_shape=jax.ShapeDtypeStruct((N, out_dim), jnp.float32),
        grid_spec=pltpu.PrefetchScalarGridSpec(
            num_scalar_prefetch=0,
            grid=grid,
            in_specs=[
                edge_spec(R),                                     # rbf
                edge_spec(H),                                     # x
                pl.BlockSpec((1, tile_e), lambda e: (0, e)),      # i (edge -> node)
                full2((R, H)),                                    # w_rbf
                pl.BlockSpec((L, H, H), lambda e: (0, 0, 0)),     # w_lins
                full2((L, H)),                                    # b_lins
                full2((H, out_dim)),                              # w_out
            ],
            out_specs=pl.BlockSpec((N, out_dim), lambda e: (0, 0)),
            scratch_shapes=[pltpu.VMEM((N, H), jnp.float32)],
        ),
        compiler_params=pltpu.CompilerParams(
            # Edge-tile axis is a reduction into the shared node accumulator.
            dimension_semantics=("arbitrary",)),
        cost_estimate=cost,
    )(rbf, x, i_row, w_rbf, w_lins, b_lins, w_out)


def init_params(key, num_radial, hidden_channels, num_layers, out_dim=1):
    k_rbf, k_lin, k_b, k_out = jax.random.split(key, 4)

    def glorot(k, shape):
        fan_in, fan_out = shape[-2], shape[-1]
        bound = sqrt(6.0 / (fan_in + fan_out))
        return jax.random.uniform(k, shape, minval=-bound, maxval=bound,
                                  dtype=jnp.float32)

    w_rbf = glorot(k_rbf, (num_radial, hidden_channels))      # lin_rbf (no bias)
    w_lins = glorot(k_lin, (num_layers, hidden_channels, hidden_channels))
    # reset_parameters() zeroes biases; use small nonzero values so the
    # bias-add path in the kernel is actually exercised.
    b_lins = 0.01 * jax.random.normal(k_b, (num_layers, hidden_channels),
                                      dtype=jnp.float32)
    # output_initializer='zeros' would make the output trivially zero; use the
    # module's 'glorot_orthogonal' option so the correctness check is meaningful.
    w_out = glorot(k_out, (hidden_channels, out_dim))
    return dict(w_rbf=w_rbf, w_lins=w_lins, b_lins=b_lins, w_out=w_out)


def reference_forward(x, rbf, i, num_nodes, params):
    hp = lax.Precision.HIGHEST
    h = jnp.dot(rbf, params["w_rbf"], precision=hp) * x
    node = jax.ops.segment_sum(h, i, num_segments=num_nodes)
    for l in range(params["w_lins"].shape[0]):
        node = _swish(jnp.dot(node, params["w_lins"][l], precision=hp)
                      + params["b_lins"][l])
    return jnp.dot(node, params["w_out"], precision=hp)


if __name__ == "__main__":
    num_radial = 8
    hidden_channels = 128      # DimeNet++ hidden size; keeps lanes dense
    num_layers = 3
    num_nodes = 64
    num_edges = 500            # deliberately NOT a multiple of the edge tile

    key = jax.random.PRNGKey(0)
    k_p, k_x, k_rbf, k_i = jax.random.split(key, 4)

    params = init_params(k_p, num_radial, hidden_channels, num_layers)

    x = jax.random.normal(k_x, (num_edges, hidden_channels), dtype=jnp.float32)
    rbf = jax.random.normal(k_rbf, (num_edges, num_radial), dtype=jnp.float32)
    i = jax.random.randint(k_i, (num_edges,), 0, num_nodes, dtype=jnp.int32)

    out = output_block_forward(x, rbf, i, num_nodes, params)
    out = jax.block_until_ready(out)

    ref = reference_forward(x, rbf, i, num_nodes, params)
    assert out.shape == (num_nodes, 1)
    max_diff = float(jnp.max(jnp.abs(out - ref)))
    assert jnp.allclose(out, ref, atol=1e-3, rtol=1e-3), (
        "mismatch vs reference: max abs diff = %e" % max_diff)
    print("KERNEL_OK")
</pallas_src>

<mosaic_0001>
module attributes {stable_mosaic.version = 11 : i64} {
  func.func @_output_block_kernel(%arg0: i32, %arg1: memref<256x8xf32, #tpu.memory_space<vmem>>, %arg2: memref<256x128xf32, #tpu.memory_space<vmem>>, %arg3: memref<1x256xi32, #tpu.memory_space<vmem>>, %arg4: memref<8x128xf32, #tpu.memory_space<vmem>>, %arg5: memref<3x128x128xf32, #tpu.memory_space<vmem>>, %arg6: memref<3x128xf32, #tpu.memory_space<vmem>>, %arg7: memref<128x1xf32, #tpu.memory_space<vmem>>, %arg8: memref<64x1xf32, #tpu.memory_space<vmem>>, %arg9: memref<64x128xf32, #tpu.memory_space<vmem>>) attributes {dimension_semantics = [#tpu.dimension_semantics<arbitrary>], iteration_bounds = array<i64: 2>, scalar_prefetch = 0 : i64, scratch_operands = 1 : i64, tpu.core_type = #tpu.core_type<tc>, window_params = [{transform_indices = @transform_0, window_bounds = array<i64: 256, 8>}, {transform_indices = @transform_1, window_bounds = array<i64: 256, 128>}, {transform_indices = @transform_2, window_bounds = array<i64: 1, 256>}, {pipeline_mode = #tpu.pipeline_mode<synchronous>, transform_indices = @transform_3, window_bounds = array<i64: 8, 128>}, {pipeline_mode = #tpu.pipeline_mode<synchronous>, transform_indices = @transform_4, window_bounds = array<i64: 3, 128, 128>}, {pipeline_mode = #tpu.pipeline_mode<synchronous>, transform_indices = @transform_5, window_bounds = array<i64: 3, 128>}, {pipeline_mode = #tpu.pipeline_mode<synchronous>, transform_indices = @transform_6, window_bounds = array<i64: 128, 1>}, {pipeline_mode = #tpu.pipeline_mode<synchronous>, transform_indices = @transform_7, window_bounds = array<i64: 64, 1>}]} {
    %c0_i32 = arith.constant 0 : i32
    %0 = arith.cmpi eq, %arg0, %c0_i32 : i32
    %1 = arith.extui %0 : i1 to i32
    %c0_i32_0 = arith.constant 0 : i32
    %2 = arith.cmpi ne, %1, %c0_i32_0 : i32
    scf.if %2 {
      %cst_15 = arith.constant 0.000000e+00 : f32
      %31 = vector.broadcast %cst_15 : f32 to vector<64x128xf32>
      %c0_16 = arith.constant 0 : index
      %c0_17 = arith.constant 0 : index
      %32 = vector.load %arg9[%c0_16, %c0_17] : memref<64x128xf32, #tpu.memory_space<vmem>>, vector<64x128xf32>
      tpu.vector_store %arg9[%c0_16, %c0_17], %31 {strides = array<i32>} : memref<64x128xf32, #tpu.memory_space<vmem>>, vector<64x128xf32>,
    } else {
    }
    %c0 = arith.constant 0 : index
    %c0_1 = arith.constant 0 : index
    %3 = vector.load %arg1[%c0, %c0_1] : memref<256x8xf32, #tpu.memory_space<vmem>>, vector<256x8xf32>
    %c0_2 = arith.constant 0 : index
    %c0_3 = arith.constant 0 : index
    %4 = vector.load %arg4[%c0_2, %c0_3] : memref<8x128xf32, #tpu.memory_space<vmem>>, vector<8x128xf32>
    %cst = arith.constant dense<0.000000e+00> : vector<256x128xf32>
    %5 = tpu.matmul %3, %4, %cst {dimension_numbers = #tpu.dot_dimension_numbers<[1], [0], [0], [1], [0, 0, 1, 1], [], []>} : vector<256x8xf32>, vector<8x128xf32>, vector<256x128xf32> -> vector<256x128xf32>
    %c0_4 = arith.constant 0 : index
    %c0_5 = arith.constant 0 : index
    %6 = vector.load %arg2[%c0_4, %c0_5] : memref<256x128xf32, #tpu.memory_space<vmem>>, vector<256x128xf32>
    %7 = arith.mulf %5, %6 : vector<256x128xf32>
    %c256_i32 = arith.constant 256 : i32
    %8 = arith.muli %arg0, %c256_i32 : i32
    %9 = tpu.iota {dimensions = array<i32: 0>} : vector<256x1xi32>
    %10 = vector.broadcast %8 : i32 to vector<256x1xi32>
    %11 = arith.addi %10, %9 : vector<256x1xi32>
    %c500_i32 = arith.constant 500 : i32
    %12 = vector.broadcast %c500_i32 : i32 to vector<256x1xi32>
    %13 = arith.cmpi slt, %11, %12 : vector<256x1xi32>
    %cst_6 = arith.constant 0.000000e+00 : f32
    %14 = vector.shape_cast %13 : vector<256x1xi1> to vector<256x1xi1>
    %15 = vector.broadcast %14 : vector<256x1xi1> to vector<256x128xi1>
    %16 = vector.broadcast %cst_6 : f32 to vector<256x128xf32>
    %17 = arith.select %15, %7, %16 : vector<256x128xi1>, vector<256x128xf32>
    %18 = tpu.iota {dimensions = array<i32: 0>} : vector<64x256xi32>
    %c0_7 = arith.constant 0 : index
    %c0_8 = arith.constant 0 : index
    %19 = vector.load %arg3[%c0_7, %c0_8] : memref<1x256xi32, #tpu.memory_space<vmem>>, vector<1x256xi32>
    %20 = vector.broadcast %19 : vector<1x256xi32> to vector<64x256xi32>
    %21 = arith.cmpi eq, %20, %18 : vector<64x256xi32>
    %22 = arith.extui %21 : vector<64x256xi1> to vector<64x256xi32>
    %23 = arith.sitofp %22 : vector<64x256xi32> to vector<64x256xf32>
    %c0_9 = arith.constant 0 : index
    %c0_10 = arith.constant 0 : index
    %24 = vector.load %arg9[%c0_9, %c0_10] : memref<64x128xf32, #tpu.memory_space<vmem>>, vector<64x128xf32>
    %cst_11 = arith.constant dense<0.000000e+00> : vector<64x128xf32>
    %25 = tpu.matmul %23, %17, %cst_11 {dimension_numbers = #tpu.dot_dimension_numbers<[1], [0], [0], [1], [0, 0, 1, 1], [], []>} : vector<64x256xf32>, vector<256x128xf32>, vector<64x128xf32> -> vector<64x128xf32>
    %26 = arith.addf %24, %25 : vector<64x128xf32>
    %c0_12 = arith.constant 0 : index
    %c0_13 = arith.constant 0 : index
    %27 = vector.load %arg9[%c0_12, %c0_13] : memref<64x128xf32, #tpu.memory_space<vmem>>, vector<64x128xf32>
    tpu.vector_store %arg9[%c0_12, %c0_13], %26 {strides = array<i32>} : memref<64x128xf32, #tpu.memory_space<vmem>>, vector<64x128xf32>,
    %c1_i32 = arith.constant 1 : i32
    %28 = arith.cmpi eq, %arg0, %c1_i32 : i32
    %29 = arith.extui %28 : i1 to i32
    %c0_i32_14 = arith.constant 0 : i32
    %30 = arith.cmpi ne, %29, %c0_i32_14 : i32
    scf.if %30 {
      %c0_15 = arith.constant 0 : index
      %c0_16 = arith.constant 0 : index
      %31 = vector.load %arg9[%c0_15, %c0_16] : memref<64x128xf32, #tpu.memory_space<vmem>>, vector<64x128xf32>
      %c0_17 = arith.constant 0 : index
      %c0_18 = arith.constant 0 : index
      %c0_19 = arith.constant 0 : index
      %32 = vector.load %arg5[%c0_17, %c0_18, %c0_19] : memref<3x128x128xf32, #tpu.memory_space<vmem>>, vector<1x128x128xf32>
      %33 = vector.shape_cast %32 : vector<1x128x128xf32> to vector<128x128xf32>
      %cst_20 = arith.constant dense<0.000000e+00> : vector<64x128xf32>
      %34 = tpu.matmul %31, %33, %cst_20 {dimension_numbers = #tpu.dot_dimension_numbers<[1], [0], [0], [1], [0, 0, 1, 1], [], []>} : vector<64x128xf32>, vector<128x128xf32>, vector<64x128xf32> -> vector<64x128xf32>
      %c0_21 = arith.constant 0 : index
      %c0_22 = arith.constant 0 : index
      %35 = vector.load %arg6[%c0_21, %c0_22] : memref<3x128xf32, #tpu.memory_space<vmem>>, vector<1x128xf32>
      %36 = vector.broadcast %35 : vector<1x128xf32> to vector<64x128xf32>
      %37 = arith.addf %34, %36 : vector<64x128xf32>
      %38 = arith.negf %37 : vector<64x128xf32>
      %39 = math.exp %38 : vector<64x128xf32>
      %cst_23 = arith.constant 1.000000e+00 : f32
      %40 = vector.broadcast %cst_23 : f32 to vector<64x128xf32>
      %41 = arith.addf %40, %39 : vector<64x128xf32>
      %42 = arith.divf %40, %41 : vector<64x128xf32>
      %43 = arith.mulf %37, %42 : vector<64x128xf32>
      %c1 = arith.constant 1 : index
      %c0_24 = arith.constant 0 : index
      %c0_25 = arith.constant 0 : index
      %44 = vector.load %arg5[%c1, %c0_24, %c0_25] : memref<3x128x128xf32, #tpu.memory_space<vmem>>, vector<1x128x128xf32>
      %45 = vector.shape_cast %44 : vector<1x128x128xf32> to vector<128x128xf32>
      %cst_26 = arith.constant dense<0.000000e+00> : vector<64x128xf32>
      %46 = tpu.matmul %43, %45, %cst_26 {dimension_numbers = #tpu.dot_dimension_numbers<[1], [0], [0], [1], [0, 0, 1, 1], [], []>} : vector<64x128xf32>, vector<128x128xf32>, vector<64x128xf32> -> vector<64x128xf32>
      %c1_27 = arith.constant 1 : index
      %c0_28 = arith.constant 0 : index
      %47 = vector.load %arg6[%c1_27, %c0_28] : memref<3x128xf32, #tpu.memory_space<vmem>>, vector<1x128xf32>
      %48 = vector.broadcast %47 : vector<1x128xf32> to vector<64x128xf32>
      %49 = arith.addf %46, %48 : vector<64x128xf32>
      %50 = arith.negf %49 : vector<64x128xf32>
      %51 = math.exp %50 : vector<64x128xf32>
      %cst_29 = arith.constant 1.000000e+00 : f32
      %52 = vector.broadcast %cst_29 : f32 to vector<64x128xf32>
      %53 = arith.addf %52, %51 : vector<64x128xf32>
      %54 = arith.divf %52, %53 : vector<64x128xf32>
      %55 = arith.mulf %49, %54 : vector<64x128xf32>
      %c2 = arith.constant 2 : index
      %c0_30 = arith.constant 0 : index
      %c0_31 = arith.constant 0 : index
      %56 = vector.load %arg5[%c2, %c0_30, %c0_31] : memref<3x128x128xf32, #tpu.memory_space<vmem>>, vector<1x128x128xf32>
      %57 = vector.shape_cast %56 : vector<1x128x128xf32> to vector<128x128xf32>
      %cst_32 = arith.constant dense<0.000000e+00> : vector<64x128xf32>
      %58 = tpu.matmul %55, %57, %cst_32 {dimension_numbers = #tpu.dot_dimension_numbers<[1], [0], [0], [1], [0, 0, 1, 1], [], []>} : vector<64x128xf32>, vector<128x128xf32>, vector<64x128xf32> -> vector<64x128xf32>
      %c2_33 = arith.constant 2 : index
      %c0_34 = arith.constant 0 : index
      %59 = vector.load %arg6[%c2_33, %c0_34] : memref<3x128xf32, #tpu.memory_space<vmem>>, vector<1x128xf32>
      %60 = vector.broadcast %59 : vector<1x128xf32> to vector<64x128xf32>
      %61 = arith.addf %58, %60 : vector<64x128xf32>
      %62 = arith.negf %61 : vector<64x128xf32>
      %63 = math.exp %62 : vector<64x128xf32>
      %cst_35 = arith.constant 1.000000e+00 : f32
      %64 = vector.broadcast %cst_35 : f32 to vector<64x128xf32>
      %65 = arith.addf %64, %63 : vector<64x128xf32>
      %66 = arith.divf %64, %65 : vector<64x128xf32>
      %67 = arith.mulf %61, %66 : vector<64x128xf32>
      %c0_36 = arith.constant 0 : index
      %c0_37 = arith.constant 0 : index
      %68 = vector.load %arg7[%c0_36, %c0_37] : memref<128x1xf32, #tpu.memory_space<vmem>>, vector<128x1xf32>
      %cst_38 = arith.constant dense<0.000000e+00> : vector<64x1xf32>
      %69 = tpu.matmul %67, %68, %cst_38 {dimension_numbers = #tpu.dot_dimension_numbers<[1], [0], [0], [1], [0, 0, 1, 1], [], []>} : vector<64x128xf32>, vector<128x1xf32>, vector<64x1xf32> -> vector<64x1xf32>
      %c0_39 = arith.constant 0 : index
      %c0_40 = arith.constant 0 : index
      %70 = vector.load %arg8[%c0_39, %c0_40] : memref<64x1xf32, #tpu.memory_space<vmem>>, vector<64x1xf32>
      tpu.vector_store %arg8[%c0_39, %c0_40], %69 {strides = array<i32>} : memref<64x1xf32, #tpu.memory_space<vmem>>, vector<64x1xf32>,
    } else {
    }
    return
  }
  func.func @transform_0(%arg0: i32) -> (i32, i32) {
    %c0_i32 = arith.constant 0 : i32
    %c0_i32_0 = arith.constant 0 : i32
    return %arg0, %c0_i32 : i32, i32
  }
  func.func @transform_1(%arg0: i32) -> (i32, i32) {
    %c0_i32 = arith.constant 0 : i32
    %c0_i32_0 = arith.constant 0 : i32
    return %arg0, %c0_i32 : i32, i32
  }
  func.func @transform_2(%arg0: i32) -> (i32, i32) {
    %c0_i32 = arith.constant 0 : i32
    %c0_i32_0 = arith.constant 0 : i32
    return %c0_i32, %arg0 : i32, i32
  }
  func.func @transform_3(%arg0: i32) -> (i32, i32) {
    %c0_i32 = arith.constant 0 : i32
    %c0_i32_0 = arith.constant 0 : i32
    %c0_i32_1 = arith.constant 0 : i32
    return %c0_i32, %c0_i32_0 : i32, i32
  }
  func.func @transform_4(%arg0: i32) -> (i32, i32, i32) {
    %c0_i32 = arith.constant 0 : i32
    %c0_i32_0 = arith.constant 0 : i32
    %c0_i32_1 = arith.constant 0 : i32
    %c0_i32_2 = arith.constant 0 : i32
    return %c0_i32, %c0_i32_0, %c0_i32_1 : i32, i32, i32
  }
  func.func @transform_5(%arg0: i32) -> (i32, i32) {
    %c0_i32 = arith.constant 0 : i32
    %c0_i32_0 = arith.constant 0 : i32
    %c0_i32_1 = arith.constant 0 : i32
    return %c0_i32, %c0_i32_0 : i32, i32
  }
  func.func @transform_6(%arg0: i32) -> (i32, i32) {
    %c0_i32 = arith.constant 0 : i32
    %c0_i32_0 = arith.constant 0 : i32
    %c0_i32_1 = arith.constant 0 : i32
    return %c0_i32, %c0_i32_0 : i32, i32
  }
  func.func @transform_7(%arg0: i32) -> (i32, i32) {
    %c0_i32 = arith.constant 0 : i32
    %c0_i32_0 = arith.constant 0 : i32
    %c0_i32_1 = arith.constant 0 : i32
    return %c0_i32, %c0_i32_0 : i32, i32
  }
}

</mosaic_0001>

<llo_original>
// kernel: tpu_custom_call.1
$region0: #{tpu_custom_call.1}
  #allocation0 [shape = 'u32[]', space=smem, size = 0x4, offset = 0x4, fixed_abs, tag = 'smem constant byte address 0x4 - core index']
  #allocation1 [shape = 'u32[144,128]{1,0:T(1,128)}', space=vmem, size = 0x12000, scoped, tag = 'internal scratch']
  #allocation2 [shape = 'f32[64,128]{1,0:T(8,128)}', space=vmem, size = 0x8000, scoped, tag = 'scratch operand']
  %s0 = inlined_call_operand.vmem [shape: f32[500,8], index: 0, kind: input, shape index: {}]
  %s1 = inlined_call_operand.vmem [shape: f32[500,128], index: 1, kind: input, shape index: {}]
  %s2 = inlined_call_operand.vmem [shape: s32[1,500], index: 2, kind: input, shape index: {}]
  %s3 = inlined_call_operand.vmem [shape: f32[8,128], index: 3, kind: input, shape index: {}]
  %s4 = inlined_call_operand.hbm [shape: f32[3,128,128], index: 4, kind: input, shape index: {}]
  %s5 = inlined_call_operand.vmem [shape: f32[3,128], index: 5, kind: input, shape index: {}]
  %s6 = inlined_call_operand.vmem [shape: f32[128,1], index: 6, kind: input, shape index: {}]
  %s7 = inlined_call_operand.vmem [shape: f32[64,1], index: 7, kind: output, shape index: {}]
  %s8 = sld [smem:[#allocation0]]
  $region73: #{tpu_custom_call.1} parent=0
    _
  %s10 = ssub.s32 1, %s8
  %s11 = scalar_select 0, %s10, %s8
  $region1: #{tpu_custom_call.1} parent=0
    #allocation3 [shape = 'u8[196608]{0}', space=vmem, size = 0x30000, scoped, tag = 'input window, operand 4, single buffered']
    #allocation4 [shape = 's32[2]{0}', space=sflag, size = 0x8, scoped, tag = 'scoped memory for tpu_custom_call.1']
    %12 = vsyncpa [#allocation4], 0
    loop: start=0, step=1, limit=4
    $region2: #{tpu_custom_call.1} parent=1 // loop_pre_header
      _
    $region3: #{tpu_custom_call.1} parent=1 // loop_header
      %s14 = sphi 0, %s18
      %p15 = scmp.ge.s32.totalorder %s14, 4
      %s24 = sphi 0, %s26
      %s27 = sphi 0, %s24
      %s28 = sphi 0, %s27
      %s44 = sphi 0, %s28
      %s50 = sphi 0, %s52
      %s53 = sphi 0, %s50
      %s54 = sphi 0, %s53
      %s70 = sphi 0, %s54
      %s76 = sphi 0, %s78
      %s79 = sphi 0, %s76
      %s80 = sphi 0, %s79
      %s96 = sphi 0, %s80
      %s100 = sphi 0, %s100
      %s102 = sphi 0, %s100
      %s103 = sphi 0, %s102
      %s117 = sphi 0, %s103
      %s121 = sphi 0, %s121
      %s123 = sphi 0, %s121
      %s124 = sphi 0, %s123
      %s138 = sphi 0, %s124
      %s142 = sphi 0, %s142
      %s144 = sphi 0, %s142
      %s145 = sphi 0, %s144
      %s159 = sphi 0, %s145
      %s163 = sphi 0, %s163
      %s165 = sphi 0, %s163
      %s166 = sphi 0, %s165
      %s180 = sphi 0, %s166
      %s184 = sphi 0, %s184
      %s186 = sphi 0, %s184
      %s187 = sphi 0, %s186
      %s201 = sphi 0, %s187
    $region4: #{tpu_custom_call.1} parent=1 // loop_header_branch
      %17 = sbr.rel (%p15) target = $region8
    $region5: #{tpu_custom_call.1} parent=1 // loop_body
      %s19 = ssub.s32 %s14, 1
      %s20 = ssub.s32 %s14, 2
      %s21 = sadd.s32 %s14, 1
      %s22 = ssub.s32 %s14, %s21
      %p23 = scmp.eq.s32.totalorder %s22, 0
      %s25 = sadd.s32 %s24, 1
      %s26 = scalar_select %p23, %s24, %s25
      %p29 = pneg %p23
      %p30 = scmp.eq.s32.totalorder %s14, 1
      %p31 = por %p29, %p30
      %p32 = scmp.ne.s32.totalorder %s24, %s27
      %p33 = scmp.eq.s32.totalorder %s14, 0
      %p34 = por %p32, %p33
      %p35 = scmp.ne.s32.totalorder %s24, %s27
      %p36 = scmp.eq.s32.totalorder %s19, 1
      %p37 = por %p35, %p36
      %p38 = scmp.ne.s32.totalorder %s27, %s28
      %p39 = scmp.eq.s32.totalorder %s19, 0
      %p40 = por %p38, %p39
      %p41 = scmp.ne.s32.totalorder %s27, %s28
      %p42 = scmp.eq.s32.totalorder %s20, 1
      %p43 = por %p41, %p42
      %p45 = scmp.ne.s32.totalorder %s28, %s44
      %p46 = scmp.eq.s32.totalorder %s20, 0
      %p47 = por %p45, %p46
      %s48 = ssub.s32 %s14, %s21
      %p49 = scmp.eq.s32.totalorder %s48, 0
      %s51 = sadd.s32 %s50, 1
      %s52 = scalar_select %p49, %s50, %s51
      %p55 = pneg %p49
      %p56 = scmp.eq.s32.totalorder %s14, 1
      %p57 = por %p55, %p56
      %p58 = scmp.ne.s32.totalorder %s50, %s53
      %p59 = scmp.eq.s32.totalorder %s14, 0
      %p60 = por %p58, %p59
      %p61 = scmp.ne.s32.totalorder %s50, %s53
      %p62 = scmp.eq.s32.totalorder %s19, 1
      %p63 = por %p61, %p62
      %p64 = scmp.ne.s32.totalorder %s53, %s54
      %p65 = scmp.eq.s32.totalorder %s19, 0
      %p66 = por %p64, %p65
      %p67 = scmp.ne.s32.totalorder %s53, %s54
      %p68 = scmp.eq.s32.totalorder %s20, 1
      %p69 = por %p67, %p68
      %p71 = scmp.ne.s32.totalorder %s54, %s70
      %p72 = scmp.eq.s32.totalorder %s20, 0
      %p73 = por %p71, %p72
      %s74 = ssub.s32 %s14, %s21
      %p75 = scmp.eq.s32.totalorder %s74, 0
      %s77 = sadd.s32 %s76, 1
      %s78 = scalar_select %p75, %s76, %s77
      %p81 = pneg %p75
      %p82 = scmp.eq.s32.totalorder %s14, 1
      %p83 = por %p81, %p82
      %p84 = scmp.ne.s32.totalorder %s76, %s79
      %p85 = scmp.eq.s32.totalorder %s14, 0
      %p86 = por %p84, %p85
      %p87 = scmp.ne.s32.totalorder %s76, %s79
      %p88 = scmp.eq.s32.totalorder %s19, 1
      %p89 = por %p87, %p88
      %p90 = scmp.ne.s32.totalorder %s79, %s80
      %p91 = scmp.eq.s32.totalorder %s19, 0
      %p92 = por %p90, %p91
      %p93 = scmp.ne.s32.totalorder %s79, %s80
      %p94 = scmp.eq.s32.totalorder %s20, 1
      %p95 = por %p93, %p94
      %p97 = scmp.ne.s32.totalorder %s80, %s96
      %p98 = scmp.eq.s32.totalorder %s20, 0
      %p99 = por %p97, %p98
      %s101 = sadd.s32 %s100, 1
      %p104 = scmp.eq.s32.totalorder %s14, 1
      %p105 = scmp.ne.s32.totalorder %s100, %s102
      %p106 = scmp.eq.s32.totalorder %s14, 0
      %p107 = por %p105, %p106
      %p108 = scmp.ne.s32.totalorder %s100, %s102
      %p109 = scmp.eq.s32.totalorder %s19, 1
      %p110 = por %p108, %p109
      %p111 = scmp.ne.s32.totalorder %s102, %s103
      %p112 = scmp.eq.s32.totalorder %s19, 0
      %p113 = por %p111, %p112
      %p114 = scmp.ne.s32.totalorder %s102, %s103
      %p115 = scmp.eq.s32.totalorder %s20, 1
      %p116 = por %p114, %p115
      %p118 = scmp.ne.s32.totalorder %s103, %s117
      %p119 = scmp.eq.s32.totalorder %s20, 0
      %p120 = por %p118, %p119
      %s122 = sadd.s32 %s121, 1
      %p125 = scmp.eq.s32.totalorder %s14, 1
      %p126 = scmp.ne.s32.totalorder %s121, %s123
      %p127 = scmp.eq.s32.totalorder %s14, 0
      %p128 = por %p126, %p127
      %p129 = scmp.ne.s32.totalorder %s121, %s123
      %p130 = scmp.eq.s32.totalorder %s19, 1
      %p131 = por %p129, %p130
      %p132 = scmp.ne.s32.totalorder %s123, %s124
      %p133 = scmp.eq.s32.totalorder %s19, 0
      %p134 = por %p132, %p133
      %p135 = scmp.ne.s32.totalorder %s123, %s124
      %p136 = scmp.eq.s32.totalorder %s20, 1
      %p137 = por %p135, %p136
      %p139 = scmp.ne.s32.totalorder %s124, %s138
      %p140 = scmp.eq.s32.totalorder %s20, 0
      %p141 = por %p139, %p140
      %s143 = sadd.s32 %s142, 1
      %p146 = scmp.eq.s32.totalorder %s14, 1
      %p147 = scmp.ne.s32.totalorder %s142, %s144
      %p148 = scmp.eq.s32.totalorder %s14, 0
      %p149 = por %p147, %p148
      %p150 = scmp.ne.s32.totalorder %s142, %s144
      %p151 = scmp.eq.s32.totalorder %s19, 1
      %p152 = por %p150, %p151
      %p153 = scmp.ne.s32.totalorder %s144, %s145
      %p154 = scmp.eq.s32.totalorder %s19, 0
      %p155 = por %p153, %p154
      %p156 = scmp.ne.s32.totalorder %s144, %s145
      %p157 = scmp.eq.s32.totalorder %s20, 1
      %p158 = por %p156, %p157
      %p160 = scmp.ne.s32.totalorder %s145, %s159
      %p161 = scmp.eq.s32.totalorder %s20, 0
      %p162 = por %p160, %p161
      %s164 = sadd.s32 %s163, 1
      %p167 = scmp.eq.s32.totalorder %s14, 1
      %p168 = scmp.ne.s32.totalorder %s163, %s165
      %p169 = scmp.eq.s32.totalorder %s14, 0
      %p170 = por %p168, %p169
      %p171 = scmp.ne.s32.totalorder %s163, %s165
      %p172 = scmp.eq.s32.totalorder %s19, 1
      %p173 = por %p171, %p172
      %p174 = scmp.ne.s32.totalorder %s165, %s166
      %p175 = scmp.eq.s32.totalorder %s19, 0
      %p176 = por %p174, %p175
      %p177 = scmp.ne.s32.totalorder %s165, %s166
      %p178 = scmp.eq.s32.totalorder %s20, 1
      %p179 = por %p177, %p178
      %p181 = scmp.ne.s32.totalorder %s166, %s180
      %p182 = scmp.eq.s32.totalorder %s20, 0
      %p183 = por %p181, %p182
      %s185 = sadd.s32 %s184, 1
      %p188 = scmp.eq.s32.totalorder %s14, 1
      %p189 = scmp.ne.s32.totalorder %s184, %s186
      %p190 = scmp.eq.s32.totalorder %s14, 0
      %p191 = por %p189, %p190
      %p192 = scmp.ne.s32.totalorder %s184, %s186
      %p193 = scmp.eq.s32.totalorder %s19, 1
      %p194 = por %p192, %p193
      %p195 = scmp.ne.s32.totalorder %s186, %s187
      %p196 = scmp.eq.s32.totalorder %s19, 0
      %p197 = por %p195, %p196
      %p198 = scmp.ne.s32.totalorder %s186, %s187
      %p199 = scmp.eq.s32.totalorder %s20, 1
      %p200 = por %p198, %p199
      %p202 = scmp.ne.s32.totalorder %s187, %s201
      %p203 = scmp.eq.s32.totalorder %s20, 0
      %p204 = por %p202, %p203
      %p205 = scmp.le.s32.totalorder 1, %s14
      %p206 = scmp.lt.s32.totalorder %s14, 3
      %p207 = pnand %p205, %p206
      %p208 = pneg %p207
      // Predicated region
      $region9: #{tpu_custom_call.1} parent=5 // pred_check
        _
      $region10: #{tpu_custom_call.1} parent=5 // pred_check_branch
        %210 = sbr.rel (%p207) target = $region12
      $region11: #{tpu_custom_call.1} parent=5 // pred_region
        %s211 = ssub.s32 %s14, 1
        // Predicated region
        $region13: #{tpu_custom_call.1} parent=11 // pred_check
          %p212 = pneg %p113
        $region14: #{tpu_custom_call.1} parent=11 // pred_check_branch
          %214 = sbr.rel (%p212) target = $region16
        $region15: #{tpu_custom_call.1} parent=11 // pred_region
          _
        $region16: #{tpu_custom_call.1} parent=11 // pred_fallthru
          _
        // Predicated region
        $region17: #{tpu_custom_call.1} parent=11 // pred_check
          %p215 = pneg %p134
        $region18: #{tpu_custom_call.1} parent=11 // pred_check_branch
          %217 = sbr.rel (%p215) target = $region20
        $region19: #{tpu_custom_call.1} parent=11 // pred_region
          %s219 = ssub.s32 6144, 6144
          %220 = vsyncadd [#allocation4], %s219
          %s221 = sshll.u32 [#allocation3], 4
          %s222 = int_to_ptr.vmem [resolvable:$true] %s221
          %227 = dma.hbm_to_vmem [thread:$0]  %s4, 6144, %s222, [#allocation4], 128, 128, 8
        $region20: #{tpu_custom_call.1} parent=11 // pred_fallthru
          _
        // Predicated region
        $region21: #{tpu_custom_call.1} parent=11 // pred_check
          %p228 = pneg %p155
        $region22: #{tpu_custom_call.1} parent=11 // pred_check_branch
          %230 = sbr.rel (%p228) target = $region24
        $region23: #{tpu_custom_call.1} parent=11 // pred_region
          _
        $region24: #{tpu_custom_call.1} parent=11 // pred_fallthru
          _
        // Predicated region
        $region25: #{tpu_custom_call.1} parent=11 // pred_check
          %p231 = pneg %p176
        $region26: #{tpu_custom_call.1} parent=11 // pred_check_branch
          %233 = sbr.rel (%p231) target = $region28
        $region27: #{tpu_custom_call.1} parent=11 // pred_region
          _
        $region28: #{tpu_custom_call.1} parent=11 // pred_fallthru
          _
      $region12: #{tpu_custom_call.1} parent=5 // pred_fallthru
        _
      %p234 = scmp.lt.s32.totalorder %s14, 2
      // Predicated region
      $region29: #{tpu_custom_call.1} parent=5 // pred_check
        %p235 = pneg %p234
      $region30: #{tpu_custom_call.1} parent=5 // pred_check_branch
        %237 = sbr.rel (%p235) target = $region32
      $region31: #{tpu_custom_call.1} parent=5 // pred_region
        // Predicated region
        $region33: #{tpu_custom_call.1} parent=31 // pred_check
          %p238 = pneg %p34
        $region34: #{tpu_custom_call.1} parent=31 // pred_check_branch
          %240 = sbr.rel (%p238) target = $region36
        $region35: #{tpu_custom_call.1} parent=31 // pred_region
          %s241 = smul.u32 32, %s14
          %s242 = ssub.s32 63, %s241
          %p243 = scmp.lt.s32.totalorder %s242, 32
          %s244 = scalar_select %p243, %s242, 32
          %s245 = smul.u32 128, %s244
          %p246 = scmp.lt.s32.totalorder %s241, 62
          %s247 = scalar_select %p246, %s241, 62
          %s248 = smul.addr %s247, 8
          %s249 = scalar_lea.vmem %s0, %s248
          %s250 = smul.u32 32, %s14
          %s251 = ssub.s32 63, %s250
          %p252 = scmp.lt.s32.totalorder %s251, 32
          %s253 = scalar_select %p252, %s251, 32
          %s254 = smul.u32 128, %s253
        $region36: #{tpu_custom_call.1} parent=31 // pred_fallthru
          _
        // Predicated region
        $region37: #{tpu_custom_call.1} parent=31 // pred_check
          %p255 = pneg %p60
        $region38: #{tpu_custom_call.1} parent=31 // pred_check_branch
          %257 = sbr.rel (%p255) target = $region40
        $region39: #{tpu_custom_call.1} parent=31 // pred_region
          %s258 = smul.u32 32, %s14
          %s259 = ssub.s32 63, %s258
          %p260 = scmp.lt.s32.totalorder %s259, 32
          %s261 = scalar_select %p260, %s259, 32
          %s262 = smul.u32 128, %s261
          %p263 = scmp.lt.s32.totalorder %s258, 62
          %s264 = scalar_select %p263, %s258, 62
          %s265 = smul.addr %s264, 8
          %s266 = scalar_lea.vmem %s1, %s265
          %s267 = smul.u32 32, %s14
          %s268 = ssub.s32 63, %s267
          %p269 = scmp.lt.s32.totalorder %s268, 32
          %s270 = scalar_select %p269, %s268, 32
          %s271 = smul.u32 128, %s270
        $region40: #{tpu_custom_call.1} parent=31 // pred_fallthru
          _
        // Predicated region
        $region41: #{tpu_custom_call.1} parent=31 // pred_check
          %p272 = pneg %p86
        $region42: #{tpu_custom_call.1} parent=31 // pred_check_branch
          %274 = sbr.rel (%p272) target = $region44
        $region43: #{tpu_custom_call.1} parent=31 // pred_region
          %s275 = smul.u32 2, %s14
          %p276 = scmp.lt.s32.totalorder %s275, 3
          %s277 = scalar_select %p276, %s275, 3
          %s278 = scalar_lea.vmem %s2, %s277
          %s279 = smul.u32 2, %s14
        $region44: #{tpu_custom_call.1} parent=31 // pred_fallthru
          _
      $region32: #{tpu_custom_call.1} parent=5 // pred_fallthru
        _
      %p280 = scmp.le.s32.totalorder 1, %s14
      %p281 = scmp.lt.s32.totalorder %s14, 3
      %p282 = pnand %p280, %p281
      %p283 = pneg %p282
      // Predicated region
      $region45: #{tpu_custom_call.1} parent=5 // pred_check
        _
      $region46: #{tpu_custom_call.1} parent=5 // pred_check_branch
        %285 = sbr.rel (%p282) target = $region48
      $region47: #{tpu_custom_call.1} parent=5 // pred_region
        %s286 = ssub.s32 %s14, 1
        // Predicated region
        $region49: #{tpu_custom_call.1} parent=47 // pred_check
          %p287 = pneg %p134
        $region50: #{tpu_custom_call.1} parent=47 // pred_check_branch
          %289 = sbr.rel (%p287) target = $region52
        $region51: #{tpu_custom_call.1} parent=47 // pred_region
          %290 = dma.done [#allocation4], 6144
        $region52: #{tpu_custom_call.1} parent=47 // pred_fallthru
          _
        %s291 = smul.u32 32, %s19
        %s292 = ssub.s32 63, %s291
        %p293 = scmp.lt.s32.totalorder %s292, 32
        %s294 = scalar_select %p293, %s292, 32
        %s295 = smul.u32 128, %s294
        %p296 = scmp.lt.s32.totalorder %s291, 62
        %s297 = scalar_select %p296, %s291, 62
        %s298 = smul.addr %s297, 8
        %s299 = scalar_lea.vmem %s0, %s298
        %p300 = pneg %p40
        %p301 = pneg %p37
        %s302 = smul.u32 32, %s19
        %s303 = ssub.s32 63, %s302
        %p304 = scmp.lt.s32.totalorder %s303, 32
        %s305 = scalar_select %p304, %s303, 32
        %s306 = smul.u32 128, %s305
        %p307 = scmp.lt.s32.totalorder %s302, 62
        %s308 = scalar_select %p307, %s302, 62
        %s309 = smul.addr %s308, 8
        %s310 = scalar_lea.vmem %s1, %s309
        %p311 = pneg %p66
        %p312 = pneg %p63
        %s313 = smul.u32 2, %s19
        %p314 = scmp.lt.s32.totalorder %s313, 3
        %s315 = scalar_select %p314, %s313, 3
        %s316 = scalar_lea.vmem %s2, %s315
        %p317 = pneg %p92
        %p318 = pneg %p89
        %p319 = pneg %p113
        %p320 = pneg %p110
        %p321 = pneg %p134
        %p322 = pneg %p131
        %p323 = pneg %p155
        %p324 = pneg %p152
        %p325 = pneg %p176
        %p326 = pneg %p173
        %p327 = pneg %p197
        %p328 = pneg %p194
        %s329 = smul.u32 32, %s19
        %s330 = ssub.s32 63, %s329
        %p331 = scmp.lt.s32.totalorder %s330, 32
        %s332 = scalar_select %p331, %s330, 32
        %s333 = smul.u32 128, %s332
        %p334 = scmp.lt.s32.totalorder %s329, 62
        %s335 = scalar_select %p334, %s329, 62
        %s336 = smul.addr %s335, 8
        %s337 = scalar_lea.vmem %s0, %s336
        %s338 = smul.u32 32, %s19
        %s339 = ssub.s32 63, %s338
        %p340 = scmp.lt.s32.totalorder %s339, 32
        %s341 = scalar_select %p340, %s339, 32
        %s342 = smul.u32 128, %s341
        %s343 = smul.u32 32, %s19
        %s344 = ssub.s32 63, %s343
        %p345 = scmp.lt.s32.totalorder %s344, 32
        %s346 = scalar_select %p345, %s344, 32
        %s347 = smul.u32 128, %s346
        %p348 = scmp.lt.s32.totalorder %s343, 62
        %s349 = scalar_select %p348, %s343, 62
        %s350 = smul.addr %s349, 8
        %s351 = scalar_lea.vmem %s1, %s350
        %s352 = smul.u32 32, %s19
        %s353 = ssub.s32 63, %s352
        %p354 = scmp.lt.s32.totalorder %s353, 32
        %s355 = scalar_select %p354, %s353, 32
        %s356 = smul.u32 128, %s355
        %s357 = smul.u32 2, %s19
        %p358 = scmp.lt.s32.totalorder %s357, 3
        %s359 = scalar_select %p358, %s357, 3
        %s360 = scalar_lea.vmem %s2, %s359
        %s361 = smul.u32 2, %s19
        %p362 = scmp.eq.s32.totalorder %s19, 0
        // Predicated region
        $region53: #{tpu_custom_call.1} parent=47 // pred_check
          %p363 = pneg %p362
        $region54: #{tpu_custom_call.1} parent=47 // pred_check_branch
          %365 = sbr.rel (%p363) target = $region56
        $region55: #{tpu_custom_call.1} parent=47 // pred_region
          %366 = vst [vmem:[#allocation2] sm:$0xff] 0.0
          %367 = vst [vmem:[#allocation2 + $0x8] sm:$0xff] 0.0
          %368 = vst [vmem:[#allocation2 + $0x10] sm:$0xff] 0.0
          %369 = vst [vmem:[#allocation2 + $0x18] sm:$0xff] 0.0
          %370 = vst [vmem:[#allocation2 + $0x20] sm:$0xff] 0.0
          %371 = vst [vmem:[#allocation2 + $0x28] sm:$0xff] 0.0
          %372 = vst [vmem:[#allocation2 + $0x30] sm:$0xff] 0.0
          %373 = vst [vmem:[#allocation2 + $0x38] sm:$0xff] 0.0
        $region56: #{tpu_custom_call.1} parent=47 // pred_fallthru
          _
        %v374 = vld [vmem:[%s337] sm:$0xff]
        %v375 = vld [vmem:[%s337 + $0x8] sm:$0xff]
        %v376 = vld [vmem:[%s337 + $0x10] sm:$0xff]
        %v377 = vld [vmem:[%s337 + $0x18] sm:$0xff]
        %v378 = vld [vmem:[%s337 + $0x20] sm:$0xff]
        %v379 = vld [vmem:[%s337 + $0x28] sm:$0xff]
        %v380 = vld [vmem:[%s337 + $0x30] sm:$0xff]
        %v381 = vld [vmem:[%s337 + $0x38] sm:$0xff]
        %v382 = vld [vmem:[%s337 + $0x40] sm:$0xff]
        %v383 = vld [vmem:[%s337 + $0x48] sm:$0xff]
        %v384 = vld [vmem:[%s337 + $0x50] sm:$0xff]
        %v385 = vld [vmem:[%s337 + $0x58] sm:$0xff]
        %v386 = vld [vmem:[%s337 + $0x60] sm:$0xff]
        %v387 = vld [vmem:[%s337 + $0x68] sm:$0xff]
        %v388 = vld [vmem:[%s337 + $0x70] sm:$0xff]
        %v389 = vld [vmem:[%s337 + $0x78] sm:$0xff]
        %v390 = vld [vmem:[%s337 + $0x80] sm:$0xff]
        %v391 = vld [vmem:[%s337 + $0x88] sm:$0xff]
        %v392 = vld [vmem:[%s337 + $0x90] sm:$0xff]
        %v393 = vld [vmem:[%s337 + $0x98] sm:$0xff]
        %v394 = vld [vmem:[%s337 + $0xa0] sm:$0xff]
        %v395 = vld [vmem:[%s337 + $0xa8] sm:$0xff]
        %v396 = vld [vmem:[%s337 + $0xb0] sm:$0xff]
        %v397 = vld [vmem:[%s337 + $0xb8] sm:$0xff]
        %v398 = vld [vmem:[%s337 + $0xc0] sm:$0xff]
        %v399 = vld [vmem:[%s337 + $0xc8] sm:$0xff]
        %v400 = vld [vmem:[%s337 + $0xd0] sm:$0xff]
        %v401 = vld [vmem:[%s337 + $0xd8] sm:$0xff]
        %v402 = vld [vmem:[%s337 + $0xe0] sm:$0xff]
        %v403 = vld [vmem:[%s337 + $0xe8] sm:$0xff]
        %v404 = vld [vmem:[%s337 + $0xf0] sm:$0xff]
        %v405 = vld [vmem:[%s337 + $0xf8] sm:$0xff]
        %v406 = vld [vmem:[%s3] sm:$0xff]
        %vm407 = vcmask 64512
        %v409 = vsel %vm407, %v374, 0
        %v412 = vsel %vm407, %v375, 0
        %v415 = vsel %vm407, %v376, 0
        %v418 = vsel %vm407, %v377, 0
        %v421 = vsel %vm407, %v378, 0
        %v424 = vsel %vm407, %v379, 0
        %v427 = vsel %vm407, %v380, 0
        %v430 = vsel %vm407, %v381, 0
        %v433 = vsel %vm407, %v382, 0
        %v436 = vsel %vm407, %v383, 0
        %v439 = vsel %vm407, %v384, 0
        %v442 = vsel %vm407, %v385, 0
        %v445 = vsel %vm407, %v386, 0
        %v448 = vsel %vm407, %v387, 0
        %v451 = vsel %vm407, %v388, 0
        %v454 = vsel %vm407, %v389, 0
        %v457 = vsel %vm407, %v390, 0
        %v460 = vsel %vm407, %v391, 0
        %v463 = vsel %vm407, %v392, 0
        %v466 = vsel %vm407, %v393, 0
        %v469 = vsel %vm407, %v394, 0
        %v472 = vsel %vm407, %v395, 0
        %v475 = vsel %vm407, %v396, 0
        %v478 = vsel %vm407, %v397, 0
        %v481 = vsel %vm407, %v398, 0
        %v484 = vsel %vm407, %v399, 0
        %v487 = vsel %vm407, %v400, 0
        %v490 = vsel %vm407, %v401, 0
        %v493 = vsel %vm407, %v402, 0
        %v496 = vsel %vm407, %v403, 0
        %v499 = vsel %vm407, %v404, 0
        %v502 = vsel %vm407, %v405, 0
        %504 = vmatprep.subr.mxu0 0.0
        %505 = vmatpush1.msra.mxu0 %v406
        %506 = vmatprep.subr.mxu0 0.0
        %507 = vmatpush1.msra.mxu0 0.0
        %508 = vmatprep.subr.mxu0 0.0
        %509 = vmatpush1.msra.mxu0 0.0
        %510 = vmatprep.subr.mxu0 0.0
        %511 = vmatpush1.msra.mxu0 0.0
        %512 = vmatprep.subr.mxu0 0.0
        %513 = vmatpush1.msra.mxu0 0.0
        %514 = vmatprep.subr.mxu0 0.0
        %515 = vmatpush1.msra.mxu0 0.0
        %516 = vmatprep.subr.mxu0 0.0
        %517 = vmatpush1.msra.mxu0 0.0
        %518 = vmatprep.subr.mxu0 0.0
        %519 = vmatpush1.msra.mxu0 0.0
        %520 = vmatprep.subr.mxu0 0.0
        %521 = vmatpush1.msra.mxu0 0.0
        %522 = vmatprep.subr.mxu0 0.0
        %523 = vmatpush1.msra.mxu0 0.0
        %524 = vmatprep.subr.mxu0 0.0
        %525 = vmatpush1.msra.mxu0 0.0
        %526 = vmatprep.subr.mxu0 0.0
        %527 = vmatpush1.msra.mxu0 0.0
        %528 = vmatprep.subr.mxu0 0.0
        %529 = vmatpush1.msra.mxu0 0.0
        %530 = vmatprep.subr.mxu0 0.0
        %531 = vmatpush1.msra.mxu0 0.0
        %532 = vmatprep.subr.mxu0 0.0
        %533 = vmatpush1.msra.mxu0 0.0
        %534 = vmatprep.subr.mxu0 0.0
        %535 = vmatpush1.msra.mxu0 0.0
        %536 = vmatprep.subr.mxu0 0.0
        %537 = vmatpush1.msra.mxu0 0.0
        %538 = vmatprep.subr.mxu0 0.0
        %539 = vmatpush1.msra.mxu0 0.0
        %540 = vmatprep.subr.mxu0 0.0
        %541 = vmatpush1.msra.mxu0 0.0
        %542 = vmatprep.subr.mxu0 0.0
        %543 = vmatpush1.msra.mxu0 0.0
        %544 = vmatprep.subr.mxu0 0.0
        %545 = vmatpush1.msra.mxu0 0.0
        %546 = vmatprep.subr.mxu0 0.0
        %547 = vmatpush1.msra.mxu0 0.0
        %548 = vmatprep.subr.mxu0 0.0
        %549 = vmatpush1.msra.mxu0 0.0
        %550 = vmatprep.subr.mxu0 0.0
        %551 = vmatpush1.msra.mxu0 0.0
        %552 = vmatprep.subr.mxu0 0.0
        %553 = vmatpush1.msra.mxu0 0.0
        %554 = vmatprep.subr.mxu0 0.0
        %555 = vmatpush1.msra.mxu0 0.0
        %556 = vmatprep.subr.mxu0 0.0
        %557 = vmatpush1.msra.mxu0 0.0
        %558 = vmatprep.subr.mxu0 0.0
        %559 = vmatpush1.msra.mxu0 0.0
        %560 = vmatprep.subr.mxu0 0.0
        %561 = vmatpush1.msra.mxu0 0.0
        %562 = vmatprep.subr.mxu0 0.0
        %563 = vmatpush1.msra.mxu0 0.0
        %564 = vmatprep.subr.mxu0 0.0
        %565 = vmatpush1.msra.mxu0 0.0
        %566 = vmatprep.subr.mxu0 0.0
        %567 = vmatpush1.msra.mxu0 0.0
        %568 = vmatprep.mubr.f32.mxu0 0.0
        %569 = vmatmul.mubr.f32.gmra.mrb[0].mxu0 %v409
        %v570 = vpop.f32.mrb[0].mxu0
        %v571 = vadd.f32 0.0, %v570
        %v572 = vpop.f32.mrb[0].mxu0
        %573 = vmatprep.mubr.f32.mxu0 0.0
        %574 = vmatmul.mubr.f32.gmra.mrb[0].mxu0 %v412
        %v575 = vpop.f32.mrb[0].mxu0
        %v576 = vadd.f32 0.0, %v575
        %v577 = vpop.f32.mrb[0].mxu0
        %578 = vmatprep.mubr.f32.mxu0 0.0
        %579 = vmatmul.mubr.f32.gmra.mrb[0].mxu0 %v415
        %v580 = vpop.f32.mrb[0].mxu0
        %v581 = vadd.f32 0.0, %v580
        %v582 = vpop.f32.mrb[0].mxu0
        %583 = vmatprep.mubr.f32.mxu0 0.0
        %584 = vmatmul.mubr.f32.gmra.mrb[0].mxu0 %v418
        %v585 = vpop.f32.mrb[0].mxu0
        %v586 = vadd.f32 0.0, %v585
        %v587 = vpop.f32.mrb[0].mxu0
        %588 = vmatprep.mubr.f32.mxu0 0.0
        %589 = vmatmul.mubr.f32.gmra.mrb[0].mxu0 %v421
        %v590 = vpop.f32.mrb[0].mxu0
        %v591 = vadd.f32 0.0, %v590
        %v592 = vpop.f32.mrb[0].mxu0
        %593 = vmatprep.mubr.f32.mxu0 0.0
        %594 = vmatmul.mubr.f32.gmra.mrb[0].mxu0 %v424
        %v595 = vpop.f32.mrb[0].mxu0
        %v596 = vadd.f32 0.0, %v595
        %v597 = vpop.f32.mrb[0].mxu0
        %598 = vmatprep.mubr.f32.mxu0 0.0
        %599 = vmatmul.mubr.f32.gmra.mrb[0].mxu0 %v427
        %v600 = vpop.f32.mrb[0].mxu0
        %v601 = vadd.f32 0.0, %v600
        %v602 = vpop.f32.mrb[0].mxu0
        %603 = vmatprep.mubr.f32.mxu0 0.0
        %604 = vmatmul.mubr.f32.gmra.mrb[0].mxu0 %v430
        %v605 = vpop.f32.mrb[0].mxu0
        %v606 = vadd.f32 0.0, %v605
        %v607 = vpop.f32.mrb[0].mxu0
        %608 = vmatprep.mubr.f32.mxu0 0.0
        %609 = vmatmul.mubr.f32.gmra.mrb[0].mxu0 %v433
        %v610 = vpop.f32.mrb[0].mxu0
        %v611 = vadd.f32 0.0, %v610
        %v612 = vpop.f32.mrb[0].mxu0
        %613 = vmatprep.mubr.f32.mxu0 0.0
        %614 = vmatmul.mubr.f32.gmra.mrb[0].mxu0 %v436
        %v615 = vpop.f32.mrb[0].mxu0
        %v616 = vadd.f32 0.0, %v615
        %v617 = vpop.f32.mrb[0].mxu0
        %618 = vmatprep.mubr.f32.mxu0 0.0
        %619 = vmatmul.mubr.f32.gmra.mrb[0].mxu0 %v439
        %v620 = vpop.f32.mrb[0].mxu0
        %v621 = vadd.f32 0.0, %v620
        %v622 = vpop.f32.mrb[0].mxu0
        %623 = vmatprep.mubr.f32.mxu0 0.0
        %624 = vmatmul.mubr.f32.gmra.mrb[0].mxu0 %v442
        %v625 = vpop.f32.mrb[0].mxu0
        %v626 = vadd.f32 0.0, %v625
        %v627 = vpop.f32.mrb[0].mxu0
        %628 = vmatprep.mubr.f32.mxu0 0.0
        %629 = vmatmul.mubr.f32.gmra.mrb[0].mxu0 %v445
        %v630 = vpop.f32.mrb[0].mxu0
        %v631 = vadd.f32 0.0, %v630
        %v632 = vpop.f32.mrb[0].mxu0
        %633 = vmatprep.mubr.f32.mxu0 0.0
        %634 = vmatmul.mubr.f32.gmra.mrb[0].mxu0 %v448
        %v635 = vpop.f32.mrb[0].mxu0
        %v636 = vadd.f32 0.0, %v635
        %v637 = vpop.f32.mrb[0].mxu0
        %638 = vmatprep.mubr.f32.mxu0 0.0
        %639 = vmatmul.mubr.f32.gmra.mrb[0].mxu0 %v451
        %v640 = vpop.f32.mrb[0].mxu0
        %v641 = vadd.f32 0.0, %v640
        %v642 = vpop.f32.mrb[0].mxu0
        %643 = vmatprep.mubr.f32.mxu0 0.0
        %644 = vmatmul.mubr.f32.gmra.mrb[0].mxu0 %v454
        %v645 = vpop.f32.mrb[0].mxu0
        %v646 = vadd.f32 0.0, %v645
        %v647 = vpop.f32.mrb[0].mxu0
        %648 = vmatprep.mubr.f32.mxu0 0.0
        %649 = vmatmul.mubr.f32.gmra.mrb[0].mxu0 %v457
        %v650 = vpop.f32.mrb[0].mxu0
        %v651 = vadd.f32 0.0, %v650
        %v652 = vpop.f32.mrb[0].mxu0
        %653 = vmatprep.mubr.f32.mxu0 0.0
        %654 = vmatmul.mubr.f32.gmra.mrb[0].mxu0 %v460
        %v655 = vpop.f32.mrb[0].mxu0
        %v656 = vadd.f32 0.0, %v655
        %v657 = vpop.f32.mrb[0].mxu0
        %658 = vmatprep.mubr.f32.mxu0 0.0
        %659 = vmatmul.mubr.f32.gmra.mrb[0].mxu0 %v463
        %v660 = vpop.f32.mrb[0].mxu0
        %v661 = vadd.f32 0.0, %v660
        %v662 = vpop.f32.mrb[0].mxu0
        %663 = vmatprep.mubr.f32.mxu0 0.0
        %664 = vmatmul.mubr.f32.gmra.mrb[0].mxu0 %v466
        %v665 = vpop.f32.mrb[0].mxu0
        %v666 = vadd.f32 0.0, %v665
        %v667 = vpop.f32.mrb[0].mxu0
        %668 = vmatprep.mubr.f32.mxu0 0.0
        %669 = vmatmul.mubr.f32.gmra.mrb[0].mxu0 %v469
        %v670 = vpop.f32.mrb[0].mxu0
        %v671 = vadd.f32 0.0, %v670
        %v672 = vpop.f32.mrb[0].mxu0
        %673 = vmatprep.mubr.f32.mxu0 0.0
        %674 = vmatmul.mubr.f32.gmra.mrb[0].mxu0 %v472
        %v675 = vpop.f32.mrb[0].mxu0
        %v676 = vadd.f32 0.0, %v675
        %v677 = vpop.f32.mrb[0].mxu0
        %678 = vmatprep.mubr.f32.mxu0 0.0
        %679 = vmatmul.mubr.f32.gmra.mrb[0].mxu0 %v475
        %v680 = vpop.f32.mrb[0].mxu0
        %v681 = vadd.f32 0.0, %v680
        %v682 = vpop.f32.mrb[0].mxu0
        %683 = vmatprep.mubr.f32.mxu0 0.0
        %684 = vmatmul.mubr.f32.gmra.mrb[0].mxu0 %v478
        %v685 = vpop.f32.mrb[0].mxu0
        %v686 = vadd.f32 0.0, %v685
        %v687 = vpop.f32.mrb[0].mxu0
        %688 = vmatprep.mubr.f32.mxu0 0.0
        %689 = vmatmul.mubr.f32.gmra.mrb[0].mxu0 %v481
        %v690 = vpop.f32.mrb[0].mxu0
        %v691 = vadd.f32 0.0, %v690
        %v692 = vpop.f32.mrb[0].mxu0
        %693 = vmatprep.mubr.f32.mxu0 0.0
        %694 = vmatmul.mubr.f32.gmra.mrb[0].mxu0 %v484
        %v695 = vpop.f32.mrb[0].mxu0
        %v696 = vadd.f32 0.0, %v695
        %v697 = vpop.f32.mrb[0].mxu0
        %698 = vmatprep.mubr.f32.mxu0 0.0
        %699 = vmatmul.mubr.f32.gmra.mrb[0].mxu0 %v487
        %v700 = vpop.f32.mrb[0].mxu0
        %v701 = vadd.f32 0.0, %v700
        %v702 = vpop.f32.mrb[0].mxu0
        %703 = vmatprep.mubr.f32.mxu0 0.0
        %704 = vmatmul.mubr.f32.gmra.mrb[0].mxu0 %v490
        %v705 = vpop.f32.mrb[0].mxu0
        %v706 = vadd.f32 0.0, %v705
        %v707 = vpop.f32.mrb[0].mxu0
        %708 = vmatprep.mubr.f32.mxu0 0.0
        %709 = vmatmul.mubr.f32.gmra.mrb[0].mxu0 %v493
        %v710 = vpop.f32.mrb[0].mxu0
        %v711 = vadd.f32 0.0, %v710
        %v712 = vpop.f32.mrb[0].mxu0
        %713 = vmatprep.mubr.f32.mxu0 0.0
        %714 = vmatmul.mubr.f32.gmra.mrb[0].mxu0 %v496
        %v715 = vpop.f32.mrb[0].mxu0
        %v716 = vadd.f32 0.0, %v715
        %v717 = vpop.f32.mrb[0].mxu0
        %718 = vmatprep.mubr.f32.mxu0 0.0
        %719 = vmatmul.mubr.f32.gmra.mrb[0].mxu0 %v499
        %v720 = vpop.f32.mrb[0].mxu0
        %v721 = vadd.f32 0.0, %v720
        %v722 = vpop.f32.mrb[0].mxu0
        %723 = vmatprep.mubr.f32.mxu0 0.0
        %724 = vmatmul.mubr.f32.gmra.mrb[0].mxu0 %v502
        %v725 = vpop.f32.mrb[0].mxu0
        %v726 = vadd.f32 0.0, %v725
        %v727 = vpop.f32.mrb[0].mxu0
        %728 = vdwg.mxu0
        %v729 = vld [vmem:[%s351] sm:$0xff]
        %v730 = vld [vmem:[%s351 + $0x8] sm:$0xff]
        %v731 = vld [vmem:[%s351 + $0x10] sm:$0xff]
        %v732 = vld [vmem:[%s351 + $0x18] sm:$0xff]
        %v733 = vld [vmem:[%s351 + $0x20] sm:$0xff]
        %v734 = vld [vmem:[%s351 + $0x28] sm:$0xff]
        %v735 = vld [vmem:[%s351 + $0x30] sm:$0xff]
        %v736 = vld [vmem:[%s351 + $0x38] sm:$0xff]
        %v737 = vld [vmem:[%s351 + $0x40] sm:$0xff]
        %v738 = vld [vmem:[%s351 + $0x48] sm:$0xff]
        %v739 = vld [vmem:[%s351 + $0x50] sm:$0xff]
        %v740 = vld [vmem:[%s351 + $0x58] sm:$0xff]
        %v741 = vld [vmem:[%s351 + $0x60] sm:$0xff]
        %v742 = vld [vmem:[%s351 + $0x68] sm:$0xff]
        %v743 = vld [vmem:[%s351 + $0x70] sm:$0xff]
        %v744 = vld [vmem:[%s351 + $0x78] sm:$0xff]
        %v745 = vld [vmem:[%s351 + $0x80] sm:$0xff]
        %v746 = vld [vmem:[%s351 + $0x88] sm:$0xff]
        %v747 = vld [vmem:[%s351 + $0x90] sm:$0xff]
        %v748 = vld [vmem:[%s351 + $0x98] sm:$0xff]
        %v749 = vld [vmem:[%s351 + $0xa0] sm:$0xff]
        %v750 = vld [vmem:[%s351 + $0xa8] sm:$0xff]
        %v751 = vld [vmem:[%s351 + $0xb0] sm:$0xff]
        %v752 = vld [vmem:[%s351 + $0xb8] sm:$0xff]
        %v753 = vld [vmem:[%s351 + $0xc0] sm:$0xff]
        %v754 = vld [vmem:[%s351 + $0xc8] sm:$0xff]
        %v755 = vld [vmem:[%s351 + $0xd0] sm:$0xff]
        %v756 = vld [vmem:[%s351 + $0xd8] sm:$0xff]
        %v757 = vld [vmem:[%s351 + $0xe0] sm:$0xff]
        %v758 = vld [vmem:[%s351 + $0xe8] sm:$0xff]
        %v759 = vld [vmem:[%s351 + $0xf0] sm:$0xff]
        %v760 = vld [vmem:[%s351 + $0xf8] sm:$0xff]
        %v761 = vmul.f32 %v571, %v729
        %v762 = vmul.f32 %v576, %v730
        %v763 = vmul.f32 %v581, %v731
        %v764 = vmul.f32 %v586, %v732
        %v765 = vmul.f32 %v591, %v733
        %v766 = vmul.f32 %v596, %v734
        %v767 = vmul.f32 %v601, %v735
        %v768 = vmul.f32 %v606, %v736
        %v769 = vmul.f32 %v611, %v737
        %v770 = vmul.f32 %v616, %v738
        %v771 = vmul.f32 %v621, %v739
        %v772 = vmul.f32 %v626, %v740
        %v773 = vmul.f32 %v631, %v741
        %v774 = vmul.f32 %v636, %v742
        %v775 = vmul.f32 %v641, %v743
        %v776 = vmul.f32 %v646, %v744
        %v777 = vmul.f32 %v651, %v745
        %v778 = vmul.f32 %v656, %v746
        %v779 = vmul.f32 %v661, %v747
        %v780 = vmul.f32 %v666, %v748
        %v781 = vmul.f32 %v671, %v749
        %v782 = vmul.f32 %v676, %v750
        %v783 = vmul.f32 %v681, %v751
        %v784 = vmul.f32 %v686, %v752
        %v785 = vmul.f32 %v691, %v753
        %v786 = vmul.f32 %v696, %v754
        %v787 = vmul.f32 %v701, %v755
        %v788 = vmul.f32 %v706, %v756
        %v789 = vmul.f32 %v711, %v757
        %v790 = vmul.f32 %v716, %v758
        %v791 = vmul.f32 %v721, %v759
        %v792 = vmul.f32 %v726, %v760
        %s793 = smul.u32 %s19, 256
        %v794 = vlaneseq
        %v795 = vshrl.u32 %v794, 7
        %v796 = vadd.s32 %v795, 8
        %v797 = vadd.s32 %v795, 16
        %v798 = vadd.s32 %v795, 24
        %v799 = vadd.s32 %v795, 32
        %v800 = vadd.s32 %v795, 40
        %v801 = vadd.s32 %v795, 48
        %v802 = vadd.s32 %v795, 56
        %v803 = vadd.s32 %v795, 64
        %v804 = vadd.s32 %v795, 72
        %v805 = vadd.s32 %v795, 80
        %v806 = vadd.s32 %v795, 88
        %v807 = vadd.s32 %v795, 96
        %v808 = vadd.s32 %v795, 104
        %v809 = vadd.s32 %v795, 112
        %v810 = vadd.s32 %v795, 120
        %v811 = vadd.s32 %v795, 128
        %v812 = vadd.s32 %v795, 136
        %v813 = vadd.s32 %v795, 144
        %v814 = vadd.s32 %v795, 152
        %v815 = vadd.s32 %v795, 160
        %v816 = vadd.s32 %v795, 168
        %v817 = vadd.s32 %v795, 176
        %v818 = vadd.s32 %v795, 184
        %v819 = vadd.s32 %v795, 192
        %v820 = vadd.s32 %v795, 200
        %v821 = vadd.s32 %v795, 208
        %v822 = vadd.s32 %v795, 216
        %v823 = vadd.s32 %v795, 224
        %v824 = vadd.s32 %v795, 232
        %v825 = vadd.s32 %v795, 240
        %v826 = vadd.s32 %v795, 248
        %v827 = vstv %s793
        %v828 = vadd.s32 %v827, %v795
        %v829 = vadd.s32 %v827, %v796
        %v830 = vadd.s32 %v827, %v797
        %v831 = vadd.s32 %v827, %v798
        %v832 = vadd.s32 %v827, %v799
        %v833 = vadd.s32 %v827, %v800
        %v834 = vadd.s32 %v827, %v801
        %v835 = vadd.s32 %v827, %v802
        %v836 = vadd.s32 %v827, %v803
        %v837 = vadd.s32 %v827, %v804
        %v838 = vadd.s32 %v827, %v805
        %v839 = vadd.s32 %v827, %v806
        %v840 = vadd.s32 %v827, %v807
        %v841 = vadd.s32 %v827, %v808
        %v842 = vadd.s32 %v827, %v809
        %v843 = vadd.s32 %v827, %v810
        %v844 = vadd.s32 %v827, %v811
        %v845 = vadd.s32 %v827, %v812
        %v846 = vadd.s32 %v827, %v813
        %v847 = vadd.s32 %v827, %v814
        %v848 = vadd.s32 %v827, %v815
        %v849 = vadd.s32 %v827, %v816
        %v850 = vadd.s32 %v827, %v817
        %v851 = vadd.s32 %v827, %v818
        %v852 = vadd.s32 %v827, %v819
        %v853 = vadd.s32 %v827, %v820
        %v854 = vadd.s32 %v827, %v821
        %v855 = vadd.s32 %v827, %v822
        %v856 = vadd.s32 %v827, %v823
        %v857 = vadd.s32 %v827, %v824
        %v858 = vadd.s32 %v827, %v825
        %v859 = vadd.s32 %v827, %v826
        %vm860 = vcmp.lt.s32.totalorder %v828, 500
        %vm861 = vcmp.lt.s32.totalorder %v829, 500
        %vm862 = vcmp.lt.s32.totalorder %v830, 500
        %vm863 = vcmp.lt.s32.totalorder %v831, 500
        %vm864 = vcmp.lt.s32.totalorder %v832, 500
        %vm865 = vcmp.lt.s32.totalorder %v833, 500
        %vm866 = vcmp.lt.s32.totalorder %v834, 500
        %vm867 = vcmp.lt.s32.totalorder %v835, 500
        %vm868 = vcmp.lt.s32.totalorder %v836, 500
        %vm869 = vcmp.lt.s32.totalorder %v837, 500
        %vm870 = vcmp.lt.s32.totalorder %v838, 500
        %vm871 = vcmp.lt.s32.totalorder %v839, 500
        %vm872 = vcmp.lt.s32.totalorder %v840, 500
        %vm873 = vcmp.lt.s32.totalorder %v841, 500
        %vm874 = vcmp.lt.s32.totalorder %v842, 500
        %vm875 = vcmp.lt.s32.totalorder %v843, 500
        %vm876 = vcmp.lt.s32.totalorder %v844, 500
        %vm877 = vcmp.lt.s32.totalorder %v845, 500
        %vm878 = vcmp.lt.s32.totalorder %v846, 500
        %vm879 = vcmp.lt.s32.totalorder %v847, 500
        %vm880 = vcmp.lt.s32.totalorder %v848, 500
        %vm881 = vcmp.lt.s32.totalorder %v849, 500
        %vm882 = vcmp.lt.s32.totalorder %v850, 500
        %vm883 = vcmp.lt.s32.totalorder %v851, 500
        %vm884 = vcmp.lt.s32.totalorder %v852, 500
        %vm885 = vcmp.lt.s32.totalorder %v853, 500
        %vm886 = vcmp.lt.s32.totalorder %v854, 500
        %vm887 = vcmp.lt.s32.totalorder %v855, 500
        %vm888 = vcmp.lt.s32.totalorder %v856, 500
        %vm889 = vcmp.lt.s32.totalorder %v857, 500
        %vm890 = vcmp.lt.s32.totalorder %v858, 500
        %vm891 = vcmp.lt.s32.totalorder %v859, 500
        %v892 = vsel %vm860, 1, 0
        %v893 = vsel %vm861, 1, 0
        %v894 = vsel %vm862, 1, 0
        %v895 = vsel %vm863, 1, 0
        %v896 = vsel %vm864, 1, 0
        %v897 = vsel %vm865, 1, 0
        %v898 = vsel %vm866, 1, 0
        %v899 = vsel %vm867, 1, 0
        %v900 = vsel %vm868, 1, 0
        %v901 = vsel %vm869, 1, 0
        %v902 = vsel %vm870, 1, 0
        %v903 = vsel %vm871, 1, 0
        %v904 = vsel %vm872, 1, 0
        %v905 = vsel %vm873, 1, 0
        %v906 = vsel %vm874, 1, 0
        %v907 = vsel %vm875, 1, 0
        %v908 = vsel %vm876, 1, 0
        %v909 = vsel %vm877, 1, 0
        %v910 = vsel %vm878, 1, 0
        %v911 = vsel %vm879, 1, 0
        %v912 = vsel %vm880, 1, 0
        %v913 = vsel %vm881, 1, 0
        %v914 = vsel %vm882, 1, 0
        %v915 = vsel %vm883, 1, 0
        %v916 = vsel %vm884, 1, 0
        %v917 = vsel %vm885, 1, 0
        %v918 = vsel %vm886, 1, 0
        %v919 = vsel %vm887, 1, 0
        %v920 = vsel %vm888, 1, 0
        %v921 = vsel %vm889, 1, 0
        %v922 = vsel %vm890, 1, 0
        %v923 = vsel %vm891, 1, 0
        %vm924 = vcmp.eq.s32.totalorder %v892, 1
        %vm925 = vcmp.eq.s32.totalorder %v893, 1
        %vm926 = vcmp.eq.s32.totalorder %v894, 1
        %vm927 = vcmp.eq.s32.totalorder %v895, 1
        %vm928 = vcmp.eq.s32.totalorder %v896, 1
        %vm929 = vcmp.eq.s32.totalorder %v897, 1
        %vm930 = vcmp.eq.s32.totalorder %v898, 1
        %vm931 = vcmp.eq.s32.totalorder %v899, 1
        %vm932 = vcmp.eq.s32.totalorder %v900, 1
        %vm933 = vcmp.eq.s32.totalorder %v901, 1
        %vm934 = vcmp.eq.s32.totalorder %v902, 1
        %vm935 = vcmp.eq.s32.totalorder %v903, 1
        %vm936 = vcmp.eq.s32.totalorder %v904, 1
        %vm937 = vcmp.eq.s32.totalorder %v905, 1
        %vm938 = vcmp.eq.s32.totalorder %v906, 1
        %vm939 = vcmp.eq.s32.totalorder %v907, 1
        %vm940 = vcmp.eq.s32.totalorder %v908, 1
        %vm941 = vcmp.eq.s32.totalorder %v909, 1
        %vm942 = vcmp.eq.s32.totalorder %v910, 1
        %vm943 = vcmp.eq.s32.totalorder %v911, 1
        %vm944 = vcmp.eq.s32.totalorder %v912, 1
        %vm945 = vcmp.eq.s32.totalorder %v913, 1
        %vm946 = vcmp.eq.s32.totalorder %v914, 1
        %vm947 = vcmp.eq.s32.totalorder %v915, 1
        %vm948 = vcmp.eq.s32.totalorder %v916, 1
        %vm949 = vcmp.eq.s32.totalorder %v917, 1
        %vm950 = vcmp.eq.s32.totalorder %v918, 1
        %vm951 = vcmp.eq.s32.totalorder %v919, 1
        %vm952 = vcmp.eq.s32.totalorder %v920, 1
        %vm953 = vcmp.eq.s32.totalorder %v921, 1
        %vm954 = vcmp.eq.s32.totalorder %v922, 1
        %vm955 = vcmp.eq.s32.totalorder %v923, 1
        %v956 = vsel %vm924, %v761, 0.0
        %v957 = vsel %vm925, %v762, 0.0
        %v958 = vsel %vm926, %v763, 0.0
        %v959 = vsel %vm927, %v764, 0.0
        %v960 = vsel %vm928, %v765, 0.0
        %v961 = vsel %vm929, %v766, 0.0
        %v962 = vsel %vm930, %v767, 0.0
        %v963 = vsel %vm931, %v768, 0.0
        %v964 = vsel %vm932, %v769, 0.0
        %v965 = vsel %vm933, %v770, 0.0
        %v966 = vsel %vm934, %v771, 0.0
        %v967 = vsel %vm935, %v772, 0.0
        %v968 = vsel %vm936, %v773, 0.0
        %v969 = vsel %vm937, %v774, 0.0
        %v970 = vsel %vm938, %v775, 0.0
        %v971 = vsel %vm939, %v776, 0.0
        %v972 = vsel %vm940, %v777, 0.0
        %v973 = vsel %vm941, %v778, 0.0
        %v974 = vsel %vm942, %v779, 0.0
        %v975 = vsel %vm943, %v780, 0.0
        %v976 = vsel %vm944, %v781, 0.0
        %v977 = vsel %vm945, %v782, 0.0
        %v978 = vsel %vm946, %v783, 0.0
        %v979 = vsel %vm947, %v784, 0.0
        %v980 = vsel %vm948, %v785, 0.0
        %v981 = vsel %vm949, %v786, 0.0
        %v982 = vsel %vm950, %v787, 0.0
        %v983 = vsel %vm951, %v788, 0.0
        %v984 = vsel %vm952, %v789, 0.0
        %v985 = vsel %vm953, %v790, 0.0
        %v986 = vsel %vm954, %v791, 0.0
        %v987 = vsel %vm955, %v792, 0.0
        %v988 = vld [vmem:[%s360] sm:$0x3]
        %v989 = vlaneseq
        %v990 = vshrl.u32 %v989, 7
        %v991 = vsub.s32 0, %v990
        %v992 = vrot.slane %v988, %v991
        %v993 = vlaneseq
        %v994 = vshrl.u32 %v993, 7
        %v995 = vsub.s32 1, %v994
        %v996 = vrot.slane %v988, %v995
        %vm997 = vcmp.eq.s32.totalorder %v992, %v795
        %vm998 = vcmp.eq.s32.totalorder %v996, %v795
        %vm999 = vcmp.eq.s32.totalorder %v992, %v796
        %vm1000 = vcmp.eq.s32.totalorder %v996, %v796
        %vm1001 = vcmp.eq.s32.totalorder %v992, %v797
        %vm1002 = vcmp.eq.s32.totalorder %v996, %v797
        %vm1003 = vcmp.eq.s32.totalorder %v992, %v798
        %vm1004 = vcmp.eq.s32.totalorder %v996, %v798
        %vm1005 = vcmp.eq.s32.totalorder %v992, %v799
        %vm1006 = vcmp.eq.s32.totalorder %v996, %v799
        %vm1007 = vcmp.eq.s32.totalorder %v992, %v800
        %vm1008 = vcmp.eq.s32.totalorder %v996, %v800
        %vm1009 = vcmp.eq.s32.totalorder %v992, %v801
        %vm1010 = vcmp.eq.s32.totalorder %v996, %v801
        %vm1011 = vcmp.eq.s32.totalorder %v992, %v802
        %vm1012 = vcmp.eq.s32.totalorder %v996, %v802
        %v1013 = vsel %vm997, 1, 0
        %v1014 = vsel %vm998, 1, 0
        %v1015 = vsel %vm999, 1, 0
        %v1016 = vsel %vm1000, 1, 0
        %v1017 = vsel %vm1001, 1, 0
        %v1018 = vsel %vm1002, 1, 0
        %v1019 = vsel %vm1003, 1, 0
        %v1020 = vsel %vm1004, 1, 0
        %v1021 = vsel %vm1005, 1, 0
        %v1022 = vsel %vm1006, 1, 0
        %v1023 = vsel %vm1007, 1, 0
        %v1024 = vsel %vm1008, 1, 0
        %v1025 = vsel %vm1009, 1, 0
        %v1026 = vsel %vm1010, 1, 0
        %v1027 = vsel %vm1011, 1, 0
        %v1028 = vsel %vm1012, 1, 0
        %v1029 = vcvt.s32.f32 %v1013
        %v1030 = vcvt.s32.f32 %v1014
        %v1031 = vcvt.s32.f32 %v1015
        %v1032 = vcvt.s32.f32 %v1016
        %v1033 = vcvt.s32.f32 %v1017
        %v1034 = vcvt.s32.f32 %v1018
        %v1035 = vcvt.s32.f32 %v1019
        %v1036 = vcvt.s32.f32 %v1020
        %v1037 = vcvt.s32.f32 %v1021
        %v1038 = vcvt.s32.f32 %v1022
        %v1039 = vcvt.s32.f32 %v1023
        %v1040 = vcvt.s32.f32 %v1024
        %v1041 = vcvt.s32.f32 %v1025
        %v1042 = vcvt.s32.f32 %v1026
        %v1043 = vcvt.s32.f32 %v1027
        %v1044 = vcvt.s32.f32 %v1028
        %v1045 = vld [vmem:[#allocation2] sm:$0xff]
        %v1046 = vld [vmem:[#allocation2 + $0x8] sm:$0xff]
        %v1047 = vld [vmem:[#allocation2 + $0x10] sm:$0xff]
        %v1048 = vld [vmem:[#allocation2 + $0x18] sm:$0xff]
        %v1049 = vld [vmem:[#allocation2 + $0x20] sm:$0xff]
        %v1050 = vld [vmem:[#allocation2 + $0x28] sm:$0xff]
        %v1051 = vld [vmem:[#allocation2 + $0x30] sm:$0xff]
        %v1052 = vld [vmem:[#allocation2 + $0x38] sm:$0xff]
        %1053 = vmatprep.subr.mxu0 0.0
        %1054 = vmatpush1.msra.mxu0 %v956
        %1055 = vmatprep.subr.mxu0 0.0
        %1056 = vmatpush1.msra.mxu0 %v957
        %1057 = vmatprep.subr.mxu0 0.0
        %1058 = vmatpush1.msra.mxu0 %v958
        %1059 = vmatprep.subr.mxu0 0.0
        %1060 = vmatpush1.msra.mxu0 %v959
        %1061 = vmatprep.subr.mxu0 0.0
        %1062 = vmatpush1.msra.mxu0 %v960
        %1063 = vmatprep.subr.mxu0 0.0
        %1064 = vmatpush1.msra.mxu0 %v961
        %1065 = vmatprep.subr.mxu0 0.0
        %1066 = vmatpush1.msra.mxu0 %v962
        %1067 = vmatprep.subr.mxu0 0.0
        %1068 = vmatpush1.msra.mxu0 %v963
        %1069 = vmatprep.subr.mxu0 0.0
        %1070 = vmatpush1.msra.mxu0 %v964
        %1071 = vmatprep.subr.mxu0 0.0
        %1072 = vmatpush1.msra.mxu0 %v965
        %1073 = vmatprep.subr.mxu0 0.0
        %1074 = vmatpush1.msra.mxu0 %v966
        %1075 = vmatprep.subr.mxu0 0.0
        %1076 = vmatpush1.msra.mxu0 %v967
        %1077 = vmatprep.subr.mxu0 0.0
        %1078 = vmatpush1.msra.mxu0 %v968
        %1079 = vmatprep.subr.mxu0 0.0
        %1080 = vmatpush1.msra.mxu0 %v969
        %1081 = vmatprep.subr.mxu0 0.0
        %1082 = vmatpush1.msra.mxu0 %v970
        %1083 = vmatprep.subr.mxu0 0.0
        %1084 = vmatpush1.msra.mxu0 %v971
        %1085 = vmatprep.subr.mxu0 0.0
        %1086 = vmatpush1.msra.mxu0 %v972
        %1087 = vmatprep.subr.mxu0 0.0
        %1088 = vmatpush1.msra.mxu0 %v973
        %1089 = vmatprep.subr.mxu0 0.0
        %1090 = vmatpush1.msra.mxu0 %v974
        %1091 = vmatprep.subr.mxu0 0.0
        %1092 = vmatpush1.msra.mxu0 %v975
        %1093 = vmatprep.subr.mxu0 0.0
        %1094 = vmatpush1.msra.mxu0 %v976
        %1095 = vmatprep.subr.mxu0 0.0
        %1096 = vmatpush1.msra.mxu0 %v977
        %1097 = vmatprep.subr.mxu0 0.0
        %1098 = vmatpush1.msra.mxu0 %v978
        %1099 = vmatprep.subr.mxu0 0.0
        %1100 = vmatpush1.msra.mxu0 %v979
        %1101 = vmatprep.subr.mxu0 0.0
        %1102 = vmatpush1.msra.mxu0 %v980
        %1103 = vmatprep.subr.mxu0 0.0
        %1104 = vmatpush1.msra.mxu0 %v981
        %1105 = vmatprep.subr.mxu0 0.0
        %1106 = vmatpush1.msra.mxu0 %v982
        %1107 = vmatprep.subr.mxu0 0.0
        %1108 = vmatpush1.msra.mxu0 %v983
        %1109 = vmatprep.subr.mxu0 0.0
        %1110 = vmatpush1.msra.mxu0 %v984
        %1111 = vmatprep.subr.mxu0 0.0
        %1112 = vmatpush1.msra.mxu0 %v985
        %1113 = vmatprep.subr.mxu0 0.0
        %1114 = vmatpush1.msra.mxu0 %v986
        %1115 = vmatprep.subr.mxu0 0.0
        %1116 = vmatpush1.msra.mxu0 %v987
        %1117 = vmatprep.mubr.f32.mxu0 %v1030
        %1118 = vmatmul.mubr.f32.gmra.mrb[0].mxu0 %v1029
        %v1119 = vpop.f32.mrb[0].mxu0
        %v1120 = vadd.f32 0.0, %v1119
        %v1121 = vpop.f32.mrb[0].mxu0
        %1122 = vmatprep.mubr.f32.mxu0 %v1032
        %1123 = vmatmul.mubr.f32.gmra.mrb[0].mxu0 %v1031
        %v1124 = vpop.f32.mrb[0].mxu0
        %v1125 = vadd.f32 0.0, %v1124
        %v1126 = vpop.f32.mrb[0].mxu0
        %1127 = vmatprep.mubr.f32.mxu0 %v1034
        %1128 = vmatmul.mubr.f32.gmra.mrb[0].mxu0 %v1033
        %v1129 = vpop.f32.mrb[0].mxu0
        %v1130 = vadd.f32 0.0, %v1129
        %v1131 = vpop.f32.mrb[0].mxu0
        %1132 = vmatprep.mubr.f32.mxu0 %v1036
        %1133 = vmatmul.mubr.f32.gmra.mrb[0].mxu0 %v1035
        %v1134 = vpop.f32.mrb[0].mxu0
        %v1135 = vadd.f32 0.0, %v1134
        %v1136 = vpop.f32.mrb[0].mxu0
        %1137 = vmatprep.mubr.f32.mxu0 %v1038
        %1138 = vmatmul.mubr.f32.gmra.mrb[0].mxu0 %v1037
        %v1139 = vpop.f32.mrb[0].mxu0
        %v1140 = vadd.f32 0.0, %v1139
        %v1141 = vpop.f32.mrb[0].mxu0
        %1142 = vmatprep.mubr.f32.mxu0 %v1040
        %1143 = vmatmul.mubr.f32.gmra.mrb[0].mxu0 %v1039
        %v1144 = vpop.f32.mrb[0].mxu0
        %v1145 = vadd.f32 0.0, %v1144
        %v1146 = vpop.f32.mrb[0].mxu0
        %1147 = vmatprep.mubr.f32.mxu0 %v1042
        %1148 = vmatmul.mubr.f32.gmra.mrb[0].mxu0 %v1041
        %v1149 = vpop.f32.mrb[0].mxu0
        %v1150 = vadd.f32 0.0, %v1149
        %v1151 = vpop.f32.mrb[0].mxu0
        %1152 = vmatprep.mubr.f32.mxu0 %v1044
        %1153 = vmatmul.mubr.f32.gmra.mrb[0].mxu0 %v1043
        %v1154 = vpop.f32.mrb[0].mxu0
        %v1155 = vadd.f32 0.0, %v1154
        %v1156 = vpop.f32.mrb[0].mxu0
        %1157 = vdwg.mxu0
        %v1158 = vadd.f32 %v1045, %v1120
        %v1159 = vadd.f32 %v1046, %v1125
        %v1160 = vadd.f32 %v1047, %v1130
        %v1161 = vadd.f32 %v1048, %v1135
        %v1162 = vadd.f32 %v1049, %v1140
        %v1163 = vadd.f32 %v1050, %v1145
        %v1164 = vadd.f32 %v1051, %v1150
        %v1165 = vadd.f32 %v1052, %v1155
        %1166 = vst [vmem:[#allocation2] sm:$0xff] %v1158
        %1167 = vst [vmem:[#allocation2 + $0x8] sm:$0xff] %v1159
        %1168 = vst [vmem:[#allocation2 + $0x10] sm:$0xff] %v1160
        %1169 = vst [vmem:[#allocation2 + $0x18] sm:$0xff] %v1161
        %1170 = vst [vmem:[#allocation2 + $0x20] sm:$0xff] %v1162
        %1171 = vst [vmem:[#allocation2 + $0x28] sm:$0xff] %v1163
        %1172 = vst [vmem:[#allocation2 + $0x30] sm:$0xff] %v1164
        %1173 = vst [vmem:[#allocation2 + $0x38] sm:$0xff] %v1165
        %p1174 = scmp.eq.s32.totalorder %s19, 1
        // Predicated region
        $region57: #{tpu_custom_call.1} parent=47 // pred_check
          %p1175 = pneg %p1174
        $region58: #{tpu_custom_call.1} parent=47 // pred_check_branch
          %1177 = sbr.rel (%p1175) target = $region60
        $region59: #{tpu_custom_call.1} parent=47 // pred_region
          %v1178 = vld [vmem:[#allocation2] sm:$0xff]
          %v1179 = vld [vmem:[#allocation2 + $0x8] sm:$0xff]
          %v1180 = vld [vmem:[#allocation2 + $0x10] sm:$0xff]
          %v1181 = vld [vmem:[#allocation2 + $0x18] sm:$0xff]
          %v1182 = vld [vmem:[#allocation2 + $0x20] sm:$0xff]
          %v1183 = vld [vmem:[#allocation2 + $0x28] sm:$0xff]
          %v1184 = vld [vmem:[#allocation2 + $0x30] sm:$0xff]
          %v1185 = vld [vmem:[#allocation2 + $0x38] sm:$0xff]
          %v1186 = vld [vmem:[#allocation3] sm:$0xff]
          %v1187 = vld [vmem:[#allocation3 + $0x8] sm:$0xff]
          %v1188 = vld [vmem:[#allocation3 + $0x10] sm:$0xff]
          %v1189 = vld [vmem:[#allocation3 + $0x18] sm:$0xff]
          %v1190 = vld [vmem:[#allocation3 + $0x20] sm:$0xff]
          %v1191 = vld [vmem:[#allocation3 + $0x28] sm:$0xff]
          %v1192 = vld [vmem:[#allocation3 + $0x30] sm:$0xff]
          %v1193 = vld [vmem:[#allocation3 + $0x38] sm:$0xff]
          %v1194 = vld [vmem:[#allocation3 + $0x40] sm:$0xff]
          %v1195 = vld [vmem:[#allocation3 + $0x48] sm:$0xff]
          %v1196 = vld [vmem:[#allocation3 + $0x50] sm:$0xff]
          %v1197 = vld [vmem:[#allocation3 + $0x58] sm:$0xff]
          %v1198 = vld [vmem:[#allocation3 + $0x60] sm:$0xff]
          %v1199 = vld [vmem:[#allocation3 + $0x68] sm:$0xff]
          %v1200 = vld [vmem:[#allocation3 + $0x70] sm:$0xff]
          %v1201 = vld [vmem:[#allocation3 + $0x78] sm:$0xff]
          %v1202 = vld [vmem:[%s5] sm:$0x1]
          %v1203 = vlaneseq
          %v1204 = vshrl.u32 %v1203, 7
          %v1205 = vsub.s32 0, %v1204
          %v1206 = vrot.slane %v1202, %v1205
          %1207 = vmatprep.subr.mxu0 0.0
          %1208 = vmatpush1.msra.mxu0 %v1186
          %1209 = vmatprep.subr.mxu0 0.0
          %1210 = vmatpush1.msra.mxu0 %v1187
          %1211 = vmatprep.subr.mxu0 0.0
          %1212 = vmatpush1.msra.mxu0 %v1188
          %1213 = vmatprep.subr.mxu0 0.0
          %1214 = vmatpush1.msra.mxu0 %v1189
          %1215 = vmatprep.subr.mxu0 0.0
          %1216 = vmatpush1.msra.mxu0 %v1190
          %1217 = vmatprep.subr.mxu0 0.0
          %1218 = vmatpush1.msra.mxu0 %v1191
          %1219 = vmatprep.subr.mxu0 0.0
          %1220 = vmatpush1.msra.mxu0 %v1192
          %1221 = vmatprep.subr.mxu0 0.0
          %1222 = vmatpush1.msra.mxu0 %v1193
          %1223 = vmatprep.subr.mxu0 0.0
          %1224 = vmatpush1.msra.mxu0 %v1194
          %1225 = vmatprep.subr.mxu0 0.0
          %1226 = vmatpush1.msra.mxu0 %v1195
          %1227 = vmatprep.subr.mxu0 0.0
          %1228 = vmatpush1.msra.mxu0 %v1196
          %1229 = vmatprep.subr.mxu0 0.0
          %1230 = vmatpush1.msra.mxu0 %v1197
          %1231 = vmatprep.subr.mxu0 0.0
          %1232 = vmatpush1.msra.mxu0 %v1198
          %1233 = vmatprep.subr.mxu0 0.0
          %1234 = vmatpush1.msra.mxu0 %v1199
          %1235 = vmatprep.subr.mxu0 0.0
          %1236 = vmatpush1.msra.mxu0 %v1200
          %1237 = vmatprep.subr.mxu0 0.0
          %1238 = vmatpush1.msra.mxu0 %v1201
          %1239 = vmatprep.subr.mxu0 0.0
          %1240 = vmatpush1.msra.mxu0 0.0
          %1241 = vmatprep.subr.mxu0 0.0
          %1242 = vmatpush1.msra.mxu0 0.0
          %1243 = vmatprep.subr.mxu0 0.0
          %1244 = vmatpush1.msra.mxu0 0.0
          %1245 = vmatprep.subr.mxu0 0.0
          %1246 = vmatpush1.msra.mxu0 0.0
          %1247 = vmatprep.subr.mxu0 0.0
          %1248 = vmatpush1.msra.mxu0 0.0
          %1249 = vmatprep.subr.mxu0 0.0
          %1250 = vmatpush1.msra.mxu0 0.0
          %1251 = vmatprep.subr.mxu0 0.0
          %1252 = vmatpush1.msra.mxu0 0.0
          %1253 = vmatprep.subr.mxu0 0.0
          %1254 = vmatpush1.msra.mxu0 0.0
          %1255 = vmatprep.subr.mxu0 0.0
          %1256 = vmatpush1.msra.mxu0 0.0
          %1257 = vmatprep.subr.mxu0 0.0
          %1258 = vmatpush1.msra.mxu0 0.0
          %1259 = vmatprep.subr.mxu0 0.0
          %1260 = vmatpush1.msra.mxu0 0.0
          %1261 = vmatprep.subr.mxu0 0.0
          %1262 = vmatpush1.msra.mxu0 0.0
          %1263 = vmatprep.subr.mxu0 0.0
          %1264 = vmatpush1.msra.mxu0 0.0
          %1265 = vmatprep.subr.mxu0 0.0
          %1266 = vmatpush1.msra.mxu0 0.0
          %1267 = vmatprep.subr.mxu0 0.0
          %1268 = vmatpush1.msra.mxu0 0.0
          %1269 = vmatprep.subr.mxu0 0.0
          %1270 = vmatpush1.msra.mxu0 0.0
          %1271 = vmatprep.mubr.f32.mxu0 0.0
          %1272 = vmatmul.mubr.f32.gmra.mrb[0].mxu0 %v1178
          %v1273 = vpop.f32.mrb[0].mxu0
          %v1274 = vadd.f32 %v1206, %v1273
          %v1275 = vpop.f32.mrb[0].mxu0
          %1276 = vmatprep.mubr.f32.mxu0 0.0
          %1277 = vmatmul.mubr.f32.gmra.mrb[0].mxu0 %v1179
          %v1278 = vpop.f32.mrb[0].mxu0
          %v1279 = vadd.f32 %v1206, %v1278
          %v1280 = vpop.f32.mrb[0].mxu0
          %1281 = vmatprep.mubr.f32.mxu0 0.0
          %1282 = vmatmul.mubr.f32.gmra.mrb[0].mxu0 %v1180
          %v1283 = vpop.f32.mrb[0].mxu0
          %v1284 = vadd.f32 %v1206, %v1283
          %v1285 = vpop.f32.mrb[0].mxu0
          %1286 = vmatprep.mubr.f32.mxu0 0.0
          %1287 = vmatmul.mubr.f32.gmra.mrb[0].mxu0 %v1181
          %v1288 = vpop.f32.mrb[0].mxu0
          %v1289 = vadd.f32 %v1206, %v1288
          %v1290 = vpop.f32.mrb[0].mxu0
          %1291 = vmatprep.mubr.f32.mxu0 0.0
          %1292 = vmatmul.mubr.f32.gmra.mrb[0].mxu0 %v1182
          %v1293 = vpop.f32.mrb[0].mxu0
          %v1294 = vadd.f32 %v1206, %v1293
          %v1295 = vpop.f32.mrb[0].mxu0
          %1296 = vmatprep.mubr.f32.mxu0 0.0
          %1297 = vmatmul.mubr.f32.gmra.mrb[0].mxu0 %v1183
          %v1298 = vpop.f32.mrb[0].mxu0
          %v1299 = vadd.f32 %v1206, %v1298
          %v1300 = vpop.f32.mrb[0].mxu0
          %1301 = vmatprep.mubr.f32.mxu0 0.0
          %1302 = vmatmul.mubr.f32.gmra.mrb[0].mxu0 %v1184
          %v1303 = vpop.f32.mrb[0].mxu0
          %v1304 = vadd.f32 %v1206, %v1303
          %v1305 = vpop.f32.mrb[0].mxu0
          %1306 = vmatprep.mubr.f32.mxu0 0.0
          %1307 = vmatmul.mubr.f32.gmra.mrb[0].mxu0 %v1185
          %v1308 = vpop.f32.mrb[0].mxu0
          %v1309 = vadd.f32 %v1206, %v1308
          %v1310 = vpop.f32.mrb[0].mxu0
          %1311 = vdwg.mxu0
          %v1312 = vxor.u32 %v1274, 2147483648
          %v1313 = vxor.u32 %v1279, 2147483648
          %v1314 = vxor.u32 %v1284, 2147483648
          %v1315 = vxor.u32 %v1289, 2147483648
          %v1316 = vxor.u32 %v1294, 2147483648
          %v1317 = vxor.u32 %v1299, 2147483648
          %v1318 = vxor.u32 %v1304, 2147483648
          %v1319 = vxor.u32 %v1309, 2147483648
          %v1320 = vmul.f32 %v1312, 1.442695
          %v1321 = vpow.pop %v1320
          %v1322 = vmul.f32 %v1313, 1.442695
          %v1323 = vpow.pop %v1322
          %v1324 = vmul.f32 %v1314, 1.442695
          %v1325 = vpow.pop %v1324
          %v1326 = vmul.f32 %v1315, 1.442695
          %v1327 = vpow.pop %v1326
          %v1328 = vmul.f32 %v1316, 1.442695
          %v1329 = vpow.pop %v1328
          %v1330 = vmul.f32 %v1317, 1.442695
          %v1331 = vpow.pop %v1330
          %v1332 = vmul.f32 %v1318, 1.442695
          %v1333 = vpow.pop %v1332
          %v1334 = vmul.f32 %v1319, 1.442695
          %v1335 = vpow.pop %v1334
          %v1336 = vadd.f32 %v1321, 1.0
          %v1337 = vadd.f32 %v1323, 1.0
          %v1338 = vadd.f32 %v1325, 1.0
          %v1339 = vadd.f32 %v1327, 1.0
          %v1340 = vadd.f32 %v1329, 1.0
          %v1341 = vadd.f32 %v1331, 1.0
          %v1342 = vadd.f32 %v1333, 1.0
          %v1343 = vadd.f32 %v1335, 1.0
          %v1344 = vrcp.pop %v1336
          %v1345 = vmul.f32 1.0, %v1344
          %v1346 = vrcp.pop %v1337
          %v1347 = vmul.f32 1.0, %v1346
          %v1348 = vrcp.pop %v1338
          %v1349 = vmul.f32 1.0, %v1348
          %v1350 = vrcp.pop %v1339
          %v1351 = vmul.f32 1.0, %v1350
          %v1352 = vrcp.pop %v1340
          %v1353 = vmul.f32 1.0, %v1352
          %v1354 = vrcp.pop %v1341
          %v1355 = vmul.f32 1.0, %v1354
          %v1356 = vrcp.pop %v1342
          %v1357 = vmul.f32 1.0, %v1356
          %v1358 = vrcp.pop %v1343
          %v1359 = vmul.f32 1.0, %v1358
          %v1360 = vmul.f32 %v1274, %v1345
          %v1361 = vmul.f32 %v1279, %v1347
          %v1362 = vmul.f32 %v1284, %v1349
          %v1363 = vmul.f32 %v1289, %v1351
          %v1364 = vmul.f32 %v1294, %v1353
          %v1365 = vmul.f32 %v1299, %v1355
          %v1366 = vmul.f32 %v1304, %v1357
          %v1367 = vmul.f32 %v1309, %v1359
          %s1368 = scalar_lea.vmem [#allocation3], 128
          %v1369 = vld [vmem:[%s1368] sm:$0xff]
          %v1370 = vld [vmem:[%s1368 + $0x8] sm:$0xff]
          %v1371 = vld [vmem:[%s1368 + $0x10] sm:$0xff]
          %v1372 = vld [vmem:[%s1368 + $0x18] sm:$0xff]
          %v1373 = vld [vmem:[%s1368 + $0x20] sm:$0xff]
          %v1374 = vld [vmem:[%s1368 + $0x28] sm:$0xff]
          %v1375 = vld [vmem:[%s1368 + $0x30] sm:$0xff]
          %v1376 = vld [vmem:[%s1368 + $0x38] sm:$0xff]
          %v1377 = vld [vmem:[%s1368 + $0x40] sm:$0xff]
          %v1378 = vld [vmem:[%s1368 + $0x48] sm:$0xff]
          %v1379 = vld [vmem:[%s1368 + $0x50] sm:$0xff]
          %v1380 = vld [vmem:[%s1368 + $0x58] sm:$0xff]
          %v1381 = vld [vmem:[%s1368 + $0x60] sm:$0xff]
          %v1382 = vld [vmem:[%s1368 + $0x68] sm:$0xff]
          %v1383 = vld [vmem:[%s1368 + $0x70] sm:$0xff]
          %v1384 = vld [vmem:[%s1368 + $0x78] sm:$0xff]
          %v1385 = vld [vmem:[%s5 + $0x1] sm:$0x1]
          %v1386 = vlaneseq
          %v1387 = vshrl.u32 %v1386, 7
          %v1388 = vsub.s32 0, %v1387
          %v1389 = vrot.slane %v1385, %v1388
          %1390 = vmatprep.subr.mxu0 0.0
          %1391 = vmatpush1.msra.mxu0 %v1369
          %1392 = vmatprep.subr.mxu0 0.0
          %1393 = vmatpush1.msra.mxu0 %v1370
          %1394 = vmatprep.subr.mxu0 0.0
          %1395 = vmatpush1.msra.mxu0 %v1371
          %1396 = vmatprep.subr.mxu0 0.0
          %1397 = vmatpush1.msra.mxu0 %v1372
          %1398 = vmatprep.subr.mxu0 0.0
          %1399 = vmatpush1.msra.mxu0 %v1373
          %1400 = vmatprep.subr.mxu0 0.0
          %1401 = vmatpush1.msra.mxu0 %v1374
          %1402 = vmatprep.subr.mxu0 0.0
          %1403 = vmatpush1.msra.mxu0 %v1375
          %1404 = vmatprep.subr.mxu0 0.0
          %1405 = vmatpush1.msra.mxu0 %v1376
          %1406 = vmatprep.subr.mxu0 0.0
          %1407 = vmatpush1.msra.mxu0 %v1377
          %1408 = vmatprep.subr.mxu0 0.0
          %1409 = vmatpush1.msra.mxu0 %v1378
          %1410 = vmatprep.subr.mxu0 0.0
          %1411 = vmatpush1.msra.mxu0 %v1379
          %1412 = vmatprep.subr.mxu0 0.0
          %1413 = vmatpush1.msra.mxu0 %v1380
          %1414 = vmatprep.subr.mxu0 0.0
          %1415 = vmatpush1.msra.mxu0 %v1381
          %1416 = vmatprep.subr.mxu0 0.0
          %1417 = vmatpush1.msra.mxu0 %v1382
          %1418 = vmatprep.subr.mxu0 0.0
          %1419 = vmatpush1.msra.mxu0 %v1383
          %1420 = vmatprep.subr.mxu0 0.0
          %1421 = vmatpush1.msra.mxu0 %v1384
          %1422 = vmatprep.subr.mxu0 0.0
          %1423 = vmatpush1.msra.mxu0 0.0
          %1424 = vmatprep.subr.mxu0 0.0
          %1425 = vmatpush1.msra.mxu0 0.0
          %1426 = vmatprep.subr.mxu0 0.0
          %1427 = vmatpush1.msra.mxu0 0.0
          %1428 = vmatprep.subr.mxu0 0.0
          %1429 = vmatpush1.msra.mxu0 0.0
          %1430 = vmatprep.subr.mxu0 0.0
          %1431 = vmatpush1.msra.mxu0 0.0
          %1432 = vmatprep.subr.mxu0 0.0
          %1433 = vmatpush1.msra.mxu0 0.0
          %1434 = vmatprep.subr.mxu0 0.0
          %1435 = vmatpush1.msra.mxu0 0.0
          %1436 = vmatprep.subr.mxu0 0.0
          %1437 = vmatpush1.msra.mxu0 0.0
          %1438 = vmatprep.subr.mxu0 0.0
          %1439 = vmatpush1.msra.mxu0 0.0
          %1440 = vmatprep.subr.mxu0 0.0
          %1441 = vmatpush1.msra.mxu0 0.0
          %1442 = vmatprep.subr.mxu0 0.0
          %1443 = vmatpush1.msra.mxu0 0.0
          %1444 = vmatprep.subr.mxu0 0.0
          %1445 = vmatpush1.msra.mxu0 0.0
          %1446 = vmatprep.subr.mxu0 0.0
          %1447 = vmatpush1.msra.mxu0 0.0
          %1448 = vmatprep.subr.mxu0 0.0
          %1449 = vmatpush1.msra.mxu0 0.0
          %1450 = vmatprep.subr.mxu0 0.0
          %1451 = vmatpush1.msra.mxu0 0.0
          %1452 = vmatprep.subr.mxu0 0.0
          %1453 = vmatpush1.msra.mxu0 0.0
          %1454 = vmatprep.mubr.f32.mxu0 0.0
          %1455 = vmatmul.mubr.f32.gmra.mrb[0].mxu0 %v1360
          %v1456 = vpop.f32.mrb[0].mxu0
          %v1457 = vadd.f32 %v1389, %v1456
          %v1458 = vpop.f32.mrb[0].mxu0
          %1459 = vmatprep.mubr.f32.mxu0 0.0
          %1460 = vmatmul.mubr.f32.gmra.mrb[0].mxu0 %v1361
          %v1461 = vpop.f32.mrb[0].mxu0
          %v1462 = vadd.f32 %v1389, %v1461
          %v1463 = vpop.f32.mrb[0].mxu0
          %1464 = vmatprep.mubr.f32.mxu0 0.0
          %1465 = vmatmul.mubr.f32.gmra.mrb[0].mxu0 %v1362
          %v1466 = vpop.f32.mrb[0].mxu0
          %v1467 = vadd.f32 %v1389, %v1466
          %v1468 = vpop.f32.mrb[0].mxu0
          %1469 = vmatprep.mubr.f32.mxu0 0.0
          %1470 = vmatmul.mubr.f32.gmra.mrb[0].mxu0 %v1363
          %v1471 = vpop.f32.mrb[0].mxu0
          %v1472 = vadd.f32 %v1389, %v1471
          %v1473 = vpop.f32.mrb[0].mxu0
          %1474 = vmatprep.mubr.f32.mxu0 0.0
          %1475 = vmatmul.mubr.f32.gmra.mrb[0].mxu0 %v1364
          %v1476 = vpop.f32.mrb[0].mxu0
          %v1477 = vadd.f32 %v1389, %v1476
          %v1478 = vpop.f32.mrb[0].mxu0
          %1479 = vmatprep.mubr.f32.mxu0 0.0
          %1480 = vmatmul.mubr.f32.gmra.mrb[0].mxu0 %v1365
          %v1481 = vpop.f32.mrb[0].mxu0
          %v1482 = vadd.f32 %v1389, %v1481
          %v1483 = vpop.f32.mrb[0].mxu0
          %1484 = vmatprep.mubr.f32.mxu0 0.0
          %1485 = vmatmul.mubr.f32.gmra.mrb[0].mxu0 %v1366
          %v1486 = vpop.f32.mrb[0].mxu0
          %v1487 = vadd.f32 %v1389, %v1486
          %v1488 = vpop.f32.mrb[0].mxu0
          %1489 = vmatprep.mubr.f32.mxu0 0.0
          %1490 = vmatmul.mubr.f32.gmra.mrb[0].mxu0 %v1367
          %v1491 = vpop.f32.mrb[0].mxu0
          %v1492 = vadd.f32 %v1389, %v1491
          %v1493 = vpop.f32.mrb[0].mxu0
          %1494 = vdwg.mxu0
          %v1495 = vxor.u32 %v1457, 2147483648
          %v1496 = vxor.u32 %v1462, 2147483648
          %v1497 = vxor.u32 %v1467, 2147483648
          %v1498 = vxor.u32 %v1472, 2147483648
          %v1499 = vxor.u32 %v1477, 2147483648
          %v1500 = vxor.u32 %v1482, 2147483648
          %v1501 = vxor.u32 %v1487, 2147483648
          %v1502 = vxor.u32 %v1492, 2147483648
          %v1503 = vmul.f32 %v1495, 1.442695
          %v1504 = vpow.pop %v1503
          %v1505 = vmul.f32 %v1496, 1.442695
          %v1506 = vpow.pop %v1505
          %v1507 = vmul.f32 %v1497, 1.442695
          %v1508 = vpow.pop %v1507
          %v1509 = vmul.f32 %v1498, 1.442695
          %v1510 = vpow.pop %v1509
          %v1511 = vmul.f32 %v1499, 1.442695
          %v1512 = vpow.pop %v1511
          %v1513 = vmul.f32 %v1500, 1.442695
          %v1514 = vpow.pop %v1513
          %v1515 = vmul.f32 %v1501, 1.442695
          %v1516 = vpow.pop %v1515
          %v1517 = vmul.f32 %v1502, 1.442695
          %v1518 = vpow.pop %v1517
          %v1519 = vadd.f32 %v1504, 1.0
          %v1520 = vadd.f32 %v1506, 1.0
          %v1521 = vadd.f32 %v1508, 1.0
          %v1522 = vadd.f32 %v1510, 1.0
          %v1523 = vadd.f32 %v1512, 1.0
          %v1524 = vadd.f32 %v1514, 1.0
          %v1525 = vadd.f32 %v1516, 1.0
          %v1526 = vadd.f32 %v1518, 1.0
          %v1527 = vrcp.pop %v1519
          %v1528 = vmul.f32 1.0, %v1527
          %v1529 = vrcp.pop %v1520
          %v1530 = vmul.f32 1.0, %v1529
          %v1531 = vrcp.pop %v1521
          %v1532 = vmul.f32 1.0, %v1531
          %v1533 = vrcp.pop %v1522
          %v1534 = vmul.f32 1.0, %v1533
          %v1535 = vrcp.pop %v1523
          %v1536 = vmul.f32 1.0, %v1535
          %v1537 = vrcp.pop %v1524
          %v1538 = vmul.f32 1.0, %v1537
          %v1539 = vrcp.pop %v1525
          %v1540 = vmul.f32 1.0, %v1539
          %v1541 = vrcp.pop %v1526
          %v1542 = vmul.f32 1.0, %v1541
          %v1543 = vmul.f32 %v1457, %v1528
          %v1544 = vmul.f32 %v1462, %v1530
          %v1545 = vmul.f32 %v1467, %v1532
          %v1546 = vmul.f32 %v1472, %v1534
          %v1547 = vmul.f32 %v1477, %v1536
          %v1548 = vmul.f32 %v1482, %v1538
          %v1549 = vmul.f32 %v1487, %v1540
          %v1550 = vmul.f32 %v1492, %v1542
          %s1551 = scalar_lea.vmem [#allocation3], 256
          %v1552 = vld [vmem:[%s1551] sm:$0xff]
          %v1553 = vld [vmem:[%s1551 + $0x8] sm:$0xff]
          %v1554 = vld [vmem:[%s1551 + $0x10] sm:$0xff]
          %v1555 = vld [vmem:[%s1551 + $0x18] sm:$0xff]
          %v1556 = vld [vmem:[%s1551 + $0x20] sm:$0xff]
          %v1557 = vld [vmem:[%s1551 + $0x28] sm:$0xff]
          %v1558 = vld [vmem:[%s1551 + $0x30] sm:$0xff]
          %v1559 = vld [vmem:[%s1551 + $0x38] sm:$0xff]
          %v1560 = vld [vmem:[%s1551 + $0x40] sm:$0xff]
          %v1561 = vld [vmem:[%s1551 + $0x48] sm:$0xff]
          %v1562 = vld [vmem:[%s1551 + $0x50] sm:$0xff]
          %v1563 = vld [vmem:[%s1551 + $0x58] sm:$0xff]
          %v1564 = vld [vmem:[%s1551 + $0x60] sm:$0xff]
          %v1565 = vld [vmem:[%s1551 + $0x68] sm:$0xff]
          %v1566 = vld [vmem:[%s1551 + $0x70] sm:$0xff]
          %v1567 = vld [vmem:[%s1551 + $0x78] sm:$0xff]
          %v1568 = vld [vmem:[%s5 + $0x2] sm:$0x1]
          %v1569 = vlaneseq
          %v1570 = vshrl.u32 %v1569, 7
          %v1571 = vsub.s32 0, %v1570
          %v1572 = vrot.slane %v1568, %v1571
          %1573 = vmatprep.subr.mxu0 0.0
          %1574 = vmatpush1.msra.mxu0 %v1552
          %1575 = vmatprep.subr.mxu0 0.0
          %1576 = vmatpush1.msra.mxu0 %v1553
          %1577 = vmatprep.subr.mxu0 0.0
          %1578 = vmatpush1.msra.mxu0 %v1554
          %1579 = vmatprep.subr.mxu0 0.0
          %1580 = vmatpush1.msra.mxu0 %v1555
          %1581 = vmatprep.subr.mxu0 0.0
          %1582 = vmatpush1.msra.mxu0 %v1556
          %1583 = vmatprep.subr.mxu0 0.0
          %1584 = vmatpush1.msra.mxu0 %v1557
          %1585 = vmatprep.subr.mxu0 0.0
          %1586 = vmatpush1.msra.mxu0 %v1558
          %1587 = vmatprep.subr.mxu0 0.0
          %1588 = vmatpush1.msra.mxu0 %v1559
          %1589 = vmatprep.subr.mxu0 0.0
          %1590 = vmatpush1.msra.mxu0 %v1560
          %1591 = vmatprep.subr.mxu0 0.0
          %1592 = vmatpush1.msra.mxu0 %v1561
          %1593 = vmatprep.subr.mxu0 0.0
          %1594 = vmatpush1.msra.mxu0 %v1562
          %1595 = vmatprep.subr.mxu0 0.0
          %1596 = vmatpush1.msra.mxu0 %v1563
          %1597 = vmatprep.subr.mxu0 0.0
          %1598 = vmatpush1.msra.mxu0 %v1564
          %1599 = vmatprep.subr.mxu0 0.0
          %1600 = vmatpush1.msra.mxu0 %v1565
          %1601 = vmatprep.subr.mxu0 0.0
          %1602 = vmatpush1.msra.mxu0 %v1566
          %1603 = vmatprep.subr.mxu0 0.0
          %1604 = vmatpush1.msra.mxu0 %v1567
          %1605 = vmatprep.subr.mxu0 0.0
          %1606 = vmatpush1.msra.mxu0 0.0
          %1607 = vmatprep.subr.mxu0 0.0
          %1608 = vmatpush1.msra.mxu0 0.0
          %1609 = vmatprep.subr.mxu0 0.0
          %1610 = vmatpush1.msra.mxu0 0.0
          %1611 = vmatprep.subr.mxu0 0.0
          %1612 = vmatpush1.msra.mxu0 0.0
          %1613 = vmatprep.subr.mxu0 0.0
          %1614 = vmatpush1.msra.mxu0 0.0
          %1615 = vmatprep.subr.mxu0 0.0
          %1616 = vmatpush1.msra.mxu0 0.0
          %1617 = vmatprep.subr.mxu0 0.0
          %1618 = vmatpush1.msra.mxu0 0.0
          %1619 = vmatprep.subr.mxu0 0.0
          %1620 = vmatpush1.msra.mxu0 0.0
          %1621 = vmatprep.subr.mxu0 0.0
          %1622 = vmatpush1.msra.mxu0 0.0
          %1623 = vmatprep.subr.mxu0 0.0
          %1624 = vmatpush1.msra.mxu0 0.0
          %1625 = vmatprep.subr.mxu0 0.0
          %1626 = vmatpush1.msra.mxu0 0.0
          %1627 = vmatprep.subr.mxu0 0.0
          %1628 = vmatpush1.msra.mxu0 0.0
          %1629 = vmatprep.subr.mxu0 0.0
          %1630 = vmatpush1.msra.mxu0 0.0
          %1631 = vmatprep.subr.mxu0 0.0
          %1632 = vmatpush1.msra.mxu0 0.0
          %1633 = vmatprep.subr.mxu0 0.0
          %1634 = vmatpush1.msra.mxu0 0.0
          %1635 = vmatprep.subr.mxu0 0.0
          %1636 = vmatpush1.msra.mxu0 0.0
          %1637 = vmatprep.mubr.f32.mxu0 0.0
          %1638 = vmatmul.mubr.f32.gmra.mrb[0].mxu0 %v1543
          %v1639 = vpop.f32.mrb[0].mxu0
          %v1640 = vadd.f32 %v1572, %v1639
          %v1641 = vpop.f32.mrb[0].mxu0
          %1642 = vmatprep.mubr.f32.mxu0 0.0
          %1643 = vmatmul.mubr.f32.gmra.mrb[0].mxu0 %v1544
          %v1644 = vpop.f32.mrb[0].mxu0
          %v1645 = vadd.f32 %v1572, %v1644
          %v1646 = vpop.f32.mrb[0].mxu0
          %1647 = vmatprep.mubr.f32.mxu0 0.0
          %1648 = vmatmul.mubr.f32.gmra.mrb[0].mxu0 %v1545
          %v1649 = vpop.f32.mrb[0].mxu0
          %v1650 = vadd.f32 %v1572, %v1649
          %v1651 = vpop.f32.mrb[0].mxu0
          %1652 = vmatprep.mubr.f32.mxu0 0.0
          %1653 = vmatmul.mubr.f32.gmra.mrb[0].mxu0 %v1546
          %v1654 = vpop.f32.mrb[0].mxu0
          %v1655 = vadd.f32 %v1572, %v1654
          %v1656 = vpop.f32.mrb[0].mxu0
          %1657 = vmatprep.mubr.f32.mxu0 0.0
          %1658 = vmatmul.mubr.f32.gmra.mrb[0].mxu0 %v1547
          %v1659 = vpop.f32.mrb[0].mxu0
          %v1660 = vadd.f32 %v1572, %v1659
          %v1661 = vpop.f32.mrb[0].mxu0
          %1662 = vmatprep.mubr.f32.mxu0 0.0
          %1663 = vmatmul.mubr.f32.gmra.mrb[0].mxu0 %v1548
          %v1664 = vpop.f32.mrb[0].mxu0
          %v1665 = vadd.f32 %v1572, %v1664
          %v1666 = vpop.f32.mrb[0].mxu0
          %1667 = vmatprep.mubr.f32.mxu0 0.0
          %1668 = vmatmul.mubr.f32.gmra.mrb[0].mxu0 %v1549
          %v1669 = vpop.f32.mrb[0].mxu0
          %v1670 = vadd.f32 %v1572, %v1669
          %v1671 = vpop.f32.mrb[0].mxu0
          %1672 = vmatprep.mubr.f32.mxu0 0.0
          %1673 = vmatmul.mubr.f32.gmra.mrb[0].mxu0 %v1550
          %v1674 = vpop.f32.mrb[0].mxu0
          %v1675 = vadd.f32 %v1572, %v1674
          %v1676 = vpop.f32.mrb[0].mxu0
          %1677 = vdwg.mxu0
          %v1678 = vxor.u32 %v1640, 2147483648
          %v1679 = vxor.u32 %v1645, 2147483648
          %v1680 = vxor.u32 %v1650, 2147483648
          %v1681 = vxor.u32 %v1655, 2147483648
          %v1682 = vxor.u32 %v1660, 2147483648
          %v1683 = vxor.u32 %v1665, 2147483648
          %v1684 = vxor.u32 %v1670, 2147483648
          %v1685 = vxor.u32 %v1675, 2147483648
          %v1686 = vmul.f32 %v1678, 1.442695
          %v1687 = vpow.pop %v1686
          %v1688 = vmul.f32 %v1679, 1.442695
          %v1689 = vpow.pop %v1688
          %v1690 = vmul.f32 %v1680, 1.442695
          %v1691 = vpow.pop %v1690
          %v1692 = vmul.f32 %v1681, 1.442695
          %v1693 = vpow.pop %v1692
          %v1694 = vmul.f32 %v1682, 1.442695
          %v1695 = vpow.pop %v1694
          %v1696 = vmul.f32 %v1683, 1.442695
          %v1697 = vpow.pop %v1696
          %v1698 = vmul.f32 %v1684, 1.442695
          %v1699 = vpow.pop %v1698
          %v1700 = vmul.f32 %v1685, 1.442695
          %v1701 = vpow.pop %v1700
          %v1702 = vadd.f32 %v1687, 1.0
          %v1703 = vadd.f32 %v1689, 1.0
          %v1704 = vadd.f32 %v1691, 1.0
          %v1705 = vadd.f32 %v1693, 1.0
          %v1706 = vadd.f32 %v1695, 1.0
          %v1707 = vadd.f32 %v1697, 1.0
          %v1708 = vadd.f32 %v1699, 1.0
          %v1709 = vadd.f32 %v1701, 1.0
          %v1710 = vrcp.pop %v1702
          %v1711 = vmul.f32 1.0, %v1710
          %v1712 = vrcp.pop %v1703
          %v1713 = vmul.f32 1.0, %v1712
          %v1714 = vrcp.pop %v1704
          %v1715 = vmul.f32 1.0, %v1714
          %v1716 = vrcp.pop %v1705
          %v1717 = vmul.f32 1.0, %v1716
          %v1718 = vrcp.pop %v1706
          %v1719 = vmul.f32 1.0, %v1718
          %v1720 = vrcp.pop %v1707
          %v1721 = vmul.f32 1.0, %v1720
          %v1722 = vrcp.pop %v1708
          %v1723 = vmul.f32 1.0, %v1722
          %v1724 = vrcp.pop %v1709
          %v1725 = vmul.f32 1.0, %v1724
          %v1726 = vmul.f32 %v1640, %v1711
          %v1727 = vmul.f32 %v1645, %v1713
          %v1728 = vmul.f32 %v1650, %v1715
          %v1729 = vmul.f32 %v1655, %v1717
          %v1730 = vmul.f32 %v1660, %v1719
          %v1731 = vmul.f32 %v1665, %v1721
          %v1732 = vmul.f32 %v1670, %v1723
          %v1733 = vmul.f32 %v1675, %v1725
          %v1734 = vld [vmem:[%s6] sm:$0xff]
          %v1735 = vld [vmem:[%s6 + $0x8] sm:$0xff]
          %v1736 = vld [vmem:[%s6 + $0x10] sm:$0xff]
          %v1737 = vld [vmem:[%s6 + $0x18] sm:$0xff]
          %v1738 = vld [vmem:[%s6 + $0x20] sm:$0xff]
          %v1739 = vld [vmem:[%s6 + $0x28] sm:$0xff]
          %v1740 = vld [vmem:[%s6 + $0x30] sm:$0xff]
          %v1741 = vld [vmem:[%s6 + $0x38] sm:$0xff]
          %v1742 = vld [vmem:[%s6 + $0x40] sm:$0xff]
          %v1743 = vld [vmem:[%s6 + $0x48] sm:$0xff]
          %v1744 = vld [vmem:[%s6 + $0x50] sm:$0xff]
          %v1745 = vld [vmem:[%s6 + $0x58] sm:$0xff]
          %v1746 = vld [vmem:[%s6 + $0x60] sm:$0xff]
          %v1747 = vld [vmem:[%s6 + $0x68] sm:$0xff]
          %v1748 = vld [vmem:[%s6 + $0x70] sm:$0xff]
          %v1749 = vld [vmem:[%s6 + $0x78] sm:$0xff]
          %1750 = vmatprep.subr.mxu0 0.0
          %1751 = vmatpush1.msra.mxu0 %v1734
          %1752 = vmatprep.subr.mxu0 0.0
          %1753 = vmatpush1.msra.mxu0 %v1735
          %1754 = vmatprep.subr.mxu0 0.0
          %1755 = vmatpush1.msra.mxu0 %v1736
          %1756 = vmatprep.subr.mxu0 0.0
          %1757 = vmatpush1.msra.mxu0 %v1737
          %1758 = vmatprep.subr.mxu0 0.0
          %1759 = vmatpush1.msra.mxu0 %v1738
          %1760 = vmatprep.subr.mxu0 0.0
          %1761 = vmatpush1.msra.mxu0 %v1739
          %1762 = vmatprep.subr.mxu0 0.0
          %1763 = vmatpush1.msra.mxu0 %v1740
          %1764 = vmatprep.subr.mxu0 0.0
          %1765 = vmatpush1.msra.mxu0 %v1741
          %1766 = vmatprep.subr.mxu0 0.0
          %1767 = vmatpush1.msra.mxu0 %v1742
          %1768 = vmatprep.subr.mxu0 0.0
          %1769 = vmatpush1.msra.mxu0 %v1743
          %1770 = vmatprep.subr.mxu0 0.0
          %1771 = vmatpush1.msra.mxu0 %v1744
          %1772 = vmatprep.subr.mxu0 0.0
          %1773 = vmatpush1.msra.mxu0 %v1745
          %1774 = vmatprep.subr.mxu0 0.0
          %1775 = vmatpush1.msra.mxu0 %v1746
          %1776 = vmatprep.subr.mxu0 0.0
          %1777 = vmatpush1.msra.mxu0 %v1747
          %1778 = vmatprep.subr.mxu0 0.0
          %1779 = vmatpush1.msra.mxu0 %v1748
          %1780 = vmatprep.subr.mxu0 0.0
          %1781 = vmatpush1.msra.mxu0 %v1749
          %1782 = vmatprep.subr.mxu0 0.0
          %1783 = vmatpush1.msra.mxu0 0.0
          %1784 = vmatprep.subr.mxu0 0.0
          %1785 = vmatpush1.msra.mxu0 0.0
          %1786 = vmatprep.subr.mxu0 0.0
          %1787 = vmatpush1.msra.mxu0 0.0
          %1788 = vmatprep.subr.mxu0 0.0
          %1789 = vmatpush1.msra.mxu0 0.0
          %1790 = vmatprep.subr.mxu0 0.0
          %1791 = vmatpush1.msra.mxu0 0.0
          %1792 = vmatprep.subr.mxu0 0.0
          %1793 = vmatpush1.msra.mxu0 0.0
          %1794 = vmatprep.subr.mxu0 0.0
          %1795 = vmatpush1.msra.mxu0 0.0
          %1796 = vmatprep.subr.mxu0 0.0
          %1797 = vmatpush1.msra.mxu0 0.0
          %1798 = vmatprep.subr.mxu0 0.0
          %1799 = vmatpush1.msra.mxu0 0.0
          %1800 = vmatprep.subr.mxu0 0.0
          %1801 = vmatpush1.msra.mxu0 0.0
          %1802 = vmatprep.subr.mxu0 0.0
          %1803 = vmatpush1.msra.mxu0 0.0
          %1804 = vmatprep.subr.mxu0 0.0
          %1805 = vmatpush1.msra.mxu0 0.0
          %1806 = vmatprep.subr.mxu0 0.0
          %1807 = vmatpush1.msra.mxu0 0.0
          %1808 = vmatprep.subr.mxu0 0.0
          %1809 = vmatpush1.msra.mxu0 0.0
          %1810 = vmatprep.subr.mxu0 0.0
          %1811 = vmatpush1.msra.mxu0 0.0
          %1812 = vmatprep.subr.mxu0 0.0
          %1813 = vmatpush1.msra.mxu0 0.0
          %1814 = vmatprep.mubr.f32.mxu0 0.0
          %1815 = vmatmul.mubr.f32.gmra.mrb[0].mxu0 %v1726
          %v1816 = vpop.f32.mrb[0].mxu0
          %v1817 = vadd.f32 0.0, %v1816
          %v1818 = vpop.f32.mrb[0].mxu0
          %1819 = vmatprep.mubr.f32.mxu0 0.0
          %1820 = vmatmul.mubr.f32.gmra.mrb[0].mxu0 %v1727
          %v1821 = vpop.f32.mrb[0].mxu0
          %v1822 = vadd.f32 0.0, %v1821
          %v1823 = vpop.f32.mrb[0].mxu0
          %1824 = vmatprep.mubr.f32.mxu0 0.0
          %1825 = vmatmul.mubr.f32.gmra.mrb[0].mxu0 %v1728
          %v1826 = vpop.f32.mrb[0].mxu0
          %v1827 = vadd.f32 0.0, %v1826
          %v1828 = vpop.f32.mrb[0].mxu0
          %1829 = vmatprep.mubr.f32.mxu0 0.0
          %1830 = vmatmul.mubr.f32.gmra.mrb[0].mxu0 %v1729
          %v1831 = vpop.f32.mrb[0].mxu0
          %v1832 = vadd.f32 0.0, %v1831
          %v1833 = vpop.f32.mrb[0].mxu0
          %1834 = vmatprep.mubr.f32.mxu0 0.0
          %1835 = vmatmul.mubr.f32.gmra.mrb[0].mxu0 %v1730
          %v1836 = vpop.f32.mrb[0].mxu0
          %v1837 = vadd.f32 0.0, %v1836
          %v1838 = vpop.f32.mrb[0].mxu0
          %1839 = vmatprep.mubr.f32.mxu0 0.0
          %1840 = vmatmul.mubr.f32.gmra.mrb[0].mxu0 %v1731
          %v1841 = vpop.f32.mrb[0].mxu0
          %v1842 = vadd.f32 0.0, %v1841
          %v1843 = vpop.f32.mrb[0].mxu0
          %1844 = vmatprep.mubr.f32.mxu0 0.0
          %1845 = vmatmul.mubr.f32.gmra.mrb[0].mxu0 %v1732
          %v1846 = vpop.f32.mrb[0].mxu0
          %v1847 = vadd.f32 0.0, %v1846
          %v1848 = vpop.f32.mrb[0].mxu0
          %1849 = vmatprep.mubr.f32.mxu0 0.0
          %1850 = vmatmul.mubr.f32.gmra.mrb[0].mxu0 %v1733
          %v1851 = vpop.f32.mrb[0].mxu0
          %v1852 = vadd.f32 0.0, %v1851
          %v1853 = vpop.f32.mrb[0].mxu0
          %1854 = vdwg.mxu0
          %vm1855 = vcmask 7168
          %1856 = vst.msk [vmem:[%s7] sm:$0xff] %vm1855, %v1817
          %1857 = vst.msk [vmem:[%s7 + $0x8] sm:$0xff] %vm1855, %v1822
          %1858 = vst.msk [vmem:[%s7 + $0x10] sm:$0xff] %vm1855, %v1827
          %1859 = vst.msk [vmem:[%s7 + $0x18] sm:$0xff] %vm1855, %v1832
          %1860 = vst.msk [vmem:[%s7 + $0x20] sm:$0xff] %vm1855, %v1837
          %1861 = vst.msk [vmem:[%s7 + $0x28] sm:$0xff] %vm1855, %v1842
          %1862 = vst.msk [vmem:[%s7 + $0x30] sm:$0xff] %vm1855, %v1847
          %1863 = vst.msk [vmem:[%s7 + $0x38] sm:$0xff] %vm1855, %v1852
        $region60: #{tpu_custom_call.1} parent=47 // pred_fallthru
          _
        // Predicated region
        $region61: #{tpu_custom_call.1} parent=47 // pred_check
          %p1864 = pneg %p194
        $region62: #{tpu_custom_call.1} parent=47 // pred_check_branch
          %1866 = sbr.rel (%p1864) target = $region64
        $region63: #{tpu_custom_call.1} parent=47 // pred_region
          _
        $region64: #{tpu_custom_call.1} parent=47 // pred_fallthru
          _
        // Predicated region
        $region65: #{tpu_custom_call.1} parent=47 // pred_check
          %p1867 = pneg %p194
        $region66: #{tpu_custom_call.1} parent=47 // pred_check_branch
          %1869 = sbr.rel (%p1867) target = $region68
        $region67: #{tpu_custom_call.1} parent=47 // pred_region
          _
        $region68: #{tpu_custom_call.1} parent=47 // pred_fallthru
          _
      $region48: #{tpu_custom_call.1} parent=5 // pred_fallthru
        _
      %p1870 = scmp.le.s32.totalorder 2, %s14
      // Predicated region
      $region69: #{tpu_custom_call.1} parent=5 // pred_check
        %p1871 = pneg %p1870
      $region70: #{tpu_custom_call.1} parent=5 // pred_check_branch
        %1873 = sbr.rel (%p1871) target = $region72
      $region71: #{tpu_custom_call.1} parent=5 // pred_region
        %s1874 = ssub.s32 %s14, 2
      $region72: #{tpu_custom_call.1} parent=5 // pred_fallthru
        _
    $region6: #{tpu_custom_call.1} parent=1 // loop_footer
      %s18 = sadd.s32 1, %s14
    $region7: #{tpu_custom_call.1} parent=1 // loop_footer_branch
      %13 = sbr.rel target = $region3
    $region8: #{tpu_custom_call.1} parent=1 // loop_exit
      _
    %1875 = vsyncpa [#allocation4], 1
    %s1876 = scalar_lea.sflag [#allocation4], 1
    %1877 = vsyncpa %s1876, 1

</llo_original>
